<compile_context>
chip_gen: v5e
topology: v5e:2x2
jax: 0.10.0
libtpu: 0.0.40
codegen_flags: <defaults>
</compile_context>

<pallas_src>
import functools

import numpy as np

import jax
import jax.numpy as jnp
from jax.experimental import pallas as pl
from jax.experimental.pallas import tpu as pltpu


# ----------------------------------------------------------------------------
# Fused kernel.
#   patches1_ref : (4, B*N1, 4*Cin)  bf16  im2col of the input, one slab per pool position
#   w1_ref       : (4*Cin, C1)       bf16  conv1 weight, taps folded into rows
#   b1_ref       : (1, C1)           f32
#   selg_ref     : (4*4*B*N2, B*N1)  bf16  0/1 row-gather, rows ordered [tap][pool-pos][m]
#   w2_ref       : (4, C1, C2)       bf16  conv2 weight, one (C1, C2) slab per tap
#   b2_ref       : (1, C2)           f32
#   spread_ref   : (C2, N2*C2)       bf16  0/1 "tile channels across lane blocks"
#   mask_ref     : (B*N2, N2*C2)     f32   0/1 block-diagonal mask (row -> its own block)
#   rsum_ref     : (B, B*N2)         bf16  0/1 per-batch row-sum matrix
#   wfc1_ref     : (N2*C2, 200)      f32   fc1 weight, rows pre-permuted to (s, c) order
#   out_ref      : (B, 6)            f32
# ----------------------------------------------------------------------------
def legos_kernel(patches1_ref, w1_ref, b1_ref,
                 selg_ref, w2_ref, b2_ref,
                 spread_ref, mask_ref, rsum_ref,
                 wfc1_ref, bfc1_ref, wfc2_ref, bfc2_ref, wfc3_ref, bfc3_ref,
                 out_ref):
    f32, bf16 = jnp.float32, jnp.bfloat16
    bdot = lambda a, b: jnp.dot(a.astype(bf16), b.astype(bf16), preferred_element_type=f32)
    fdot = lambda a, b: jnp.dot(a, b, preferred_element_type=f32)

    RPT = selg_ref.shape[0] // 4        # rows per conv2 tap slab = 4 * B*N2
    BN2 = RPT // 4                      # B*N2

    # --- Lego block 1: 2x2 conv (taps folded into K) + bias + ReLU + 2x2/2 max-pool.
    w1 = w1_ref[...]
    c1 = bdot(patches1_ref[0], w1)
    for p in range(1, 4):                           # max over the 4 pool positions
        c1 = jnp.maximum(c1, bdot(patches1_ref[p], w1))
    p1 = jnp.maximum(c1 + b1_ref[...], 0.0)         # (B*N1, C1) f32; bias/ReLU once (monotone)

    # --- Lego block 2: conv2 on the in-kernel pool1 result, gather-then-weight.
    # One wide-K gather matmul produces, for each tap t, the rows of p1 needed by all
    # 4 pool positions, laid out contiguously ([tap][pos][m]).  The per-tap weight
    # contraction is then 4 small matmuls on contiguous slices; sum over taps = conv,
    # max over the 4 position blocks = pool.  (A static-index row gather of p1 was
    # considered instead of the 0/1 matmul; the matmul lowers predictably on the MXU.)
    gath = bdot(selg_ref[...], p1)                  # (4*4*B*N2, C1) f32, exact copies of bf16(p1)
    s = bdot(gath[0 * RPT:1 * RPT, :], w2_ref[0])
    for t in range(1, 4):
        s = s + bdot(gath[t * RPT:(t + 1) * RPT, :], w2_ref[t])     # (4*B*N2, C2)
    c2 = jnp.maximum(jnp.maximum(s[0 * BN2:1 * BN2, :], s[1 * BN2:2 * BN2, :]),
                     jnp.maximum(s[2 * BN2:3 * BN2, :], s[3 * BN2:4 * BN2, :]))
    p2 = jnp.maximum(c2 + b2_ref[...], 0.0)         # (B*N2, C2) f32, row = b*N2 + spatial

    # --- Flatten to a lane-dense (B, N2*C2) slab without any reshape/transpose:
    # tile channels across N2 lane blocks (matmul), mask to a block-diagonal,
    # then sum each batch's N2 rows (matmul).  The PyTorch (C,H,W) permutation is
    # baked into wfc1's row order by pack_params().
    p2wide = bdot(p2, spread_ref[...]) * mask_ref[...]   # (B*N2, N2*C2) f32
    flat = bdot(rsum_ref[...], p2wide)                   # (B, N2*C2) f32

    # --- MLP head (f32; dropout = identity at inference).
    h1 = jnp.maximum(fdot(flat, wfc1_ref[...]) + bfc1_ref[...], 0.0)
    h2 = jnp.maximum(fdot(h1, wfc2_ref[...]) + bfc2_ref[...], 0.0)
    out_ref[...] = fdot(h2, wfc3_ref[...]) + bfc3_ref[...]


# ----------------------------------------------------------------------------
# Wrapper-side helpers (layout / constant prep only).
# ----------------------------------------------------------------------------
def _pool_shapes(h, w):
    h1, w1 = (h - 1) // 2, (w - 1) // 2        # after conv1 (valid 2x2) + pool 2x2/2
    h2, w2 = (h1 - 1) // 2, (w1 - 1) // 2      # after conv2 + pool
    return h1, w1, h2, w2


@functools.lru_cache(maxsize=None)
def _gather_constants(B, H1, W1, H2, W2, C2):
    """Precomputed 0/1 matrices: conv2 im2col row-gather + flatten helpers (numpy, built once)."""
    N1, N2 = H1 * W1, H2 * W2
    BN1, BN2 = B * N1, B * N2
    # selg[(t*4 + pos)*BN2 + m, r] = 1  iff  r = b*N1 + (2*i2 + py + dy)*W1 + (2*j2 + px + dx)
    # with m = b*N2 + i2*W2 + j2, tap t = (dy, dx), pool position pos = (py, px).
    selg = np.zeros((4 * 4 * BN2, BN1), np.float32)
    offsets = [(0, 0), (0, 1), (1, 0), (1, 1)]
    for t, (dy, dx) in enumerate(offsets):
        for pos, (py, px) in enumerate(offsets):
            for b in range(B):
                for i2 in range(H2):
                    for j2 in range(W2):
                        m = b * N2 + i2 * W2 + j2
                        r = b * N1 + (2 * i2 + py + dy) * W1 + (2 * j2 + px + dx)
                        selg[(t * 4 + pos) * BN2 + m, r] = 1.0
    # spread[c, s*C2 + c] = 1 : tiles the C2 channels across the N2 lane blocks.
    spread = np.zeros((C2, N2 * C2), np.float32)
    for sp in range(N2):
        spread[np.arange(C2), sp * C2 + np.arange(C2)] = 1.0
    # mask[m, k] = 1 iff k // C2 == m % N2 : keep only row m's own lane block.
    mask = np.zeros((BN2, N2 * C2), np.float32)
    for m in range(BN2):
        sp = m % N2
        mask[m, sp * C2:(sp + 1) * C2] = 1.0
    # rsum[b, m] = 1 iff m // N2 == b : sums the N2 rows belonging to batch b.
    rsum = np.zeros((B, BN2), np.float32)
    for b in range(B):
        rsum[b, b * N2:(b + 1) * N2] = 1.0
    return selg, spread, mask, rsum


def pack_params(params, B, H, W):
    """One-time parameter packing + constant prep (kept OUT of the per-call jit path)."""
    Cin, C1 = params["w_conv1"].shape[2], params["w_conv1"].shape[3]
    C2 = params["w_conv2"].shape[3]
    H1, W1, H2, W2 = _pool_shapes(H, W)
    N2 = H2 * W2
    selg, spread, mask, rsum = _gather_constants(B, H1, W1, H2, W2, C2)
    bf16, f32 = jnp.bfloat16, jnp.float32
    # fc1 rows: PyTorch flatten order k = c*N2 + s  ->  kernel order k' = s*C2 + c.
    wfc1 = params["w_fc1"].reshape(C2, N2, -1).transpose(1, 0, 2).reshape(N2 * C2, -1)
    return {
        "w1f":    params["w_conv1"].reshape(4 * Cin, C1).astype(bf16),   # taps folded into K
        "b1":     params["b_conv1"].astype(f32),
        "selg":   jnp.asarray(selg, dtype=bf16),                         # 0/1 exact in bf16
        "w2t":    params["w_conv2"].reshape(4, C1, C2).astype(bf16),     # one (C1,C2) slab per tap
        "b2":     params["b_conv2"].astype(f32),
        "spread": jnp.asarray(spread, dtype=bf16),
        "mask":   jnp.asarray(mask, dtype=f32),
        "rsum":   jnp.asarray(rsum, dtype=bf16),
        "wfc1":   wfc1.astype(f32),
        "bfc1":   params["b_fc1"].astype(f32),
        "wfc2":   params["w_fc2"].astype(f32),
        "bfc2":   params["b_fc2"].astype(f32),
        "wfc3":   params["w_fc3"].astype(f32),
        "bfc3":   params["b_fc3"].astype(f32),
    }


def _im2col_pooled(x_nhwc, H1, W1):
    """(B,H,W,Cin) -> (4, B*H1*W1, 4*Cin): rows are pooled output positions (b, i, j);
    columns are (dy, dx, cin); one slab per 2x2 max-pool offset (py, px).
    Built from the 9 DISTINCT strided windows (combined pool-offset + conv-tap shift)."""
    B, _, _, Cin = x_nhwc.shape
    win = {(oy, ox): x_nhwc[:, oy:oy + 2 * H1:2, ox:ox + 2 * W1:2, :]   # (B,H1,W1,Cin)
           for oy in range(3) for ox in range(3)}
    slabs = []
    for py in range(2):
        for px in range(2):
            taps = [win[(py + dy, px + dx)] for dy in range(2) for dx in range(2)]
            slabs.append(jnp.concatenate(taps, axis=-1).reshape(B * H1 * W1, 4 * Cin))
    return jnp.stack(slabs, axis=0)


@jax.jit
def legos_forward(x_nchw, packed):
    B, Cin, H, W = x_nchw.shape
    H1, W1, H2, W2 = _pool_shapes(H, W)

    # NCHW -> NHWC (single transpose), cast to bf16, then the pooled im2col gather.
    x = jnp.transpose(x_nchw, (0, 2, 3, 1)).astype(jnp.bfloat16)
    patches1 = _im2col_pooled(x, H1, W1)                  # (4, B*N1, 4*Cin) bf16

    vmem = pl.BlockSpec(memory_space=pltpu.MemorySpace.VMEM)
    out = pl.pallas_call(
        legos_kernel,
        out_shape=jax.ShapeDtypeStruct((B, packed["wfc3"].shape[-1]), jnp.float32),
        in_specs=[vmem] * 15,
        out_specs=vmem,
    )(patches1, packed["w1f"], packed["b1"],
      packed["selg"], packed["w2t"], packed["b2"],
      packed["spread"], packed["mask"], packed["rsum"],
      packed["wfc1"], packed["bfc1"], packed["wfc2"], packed["bfc2"],
      packed["wfc3"], packed["bfc3"])
    return out


# ----------------------------------------------------------------------------
# Parameters + pure-XLA reference (independent path for correctness checking).
# ----------------------------------------------------------------------------
def make_params(key, h, w):
    h1, w1, h2, w2 = _pool_shapes(h, w)
    to_linear = 24 * h2 * w2
    ks = jax.random.split(key, 10)
    init = lambda k, shape, scale: (scale * jax.random.normal(k, shape)).astype(jnp.float32)
    return {
        "w_conv1": init(ks[0], (2, 2, 3, 12), 0.2),
        "b_conv1": init(ks[1], (1, 12), 0.1),
        "w_conv2": init(ks[2], (2, 2, 12, 24), 0.15),
        "b_conv2": init(ks[3], (1, 24), 0.1),
        "w_fc1":   init(ks[4], (to_linear, 200), 0.08),
        "b_fc1":   init(ks[5], (1, 200), 0.05),
        "w_fc2":   init(ks[6], (200, 100), 0.1),
        "b_fc2":   init(ks[7], (1, 100), 0.05),
        "w_fc3":   init(ks[8], (100, 6), 0.15),
        "b_fc3":   init(ks[9], (1, 6), 0.05),
    }


def reference_forward(x_nchw, params):
    hi = jax.lax.Precision.HIGHEST

    def block(x, w, b):
        y = jax.lax.conv_general_dilated(
            x, w, window_strides=(1, 1), padding="VALID",
            dimension_numbers=("NCHW", "HWIO", "NCHW"), precision=hi)
        y = jnp.maximum(y + b.reshape(1, -1, 1, 1), 0.0)
        return jax.lax.reduce_window(y, -jnp.inf, jax.lax.max,
                                     (1, 1, 2, 2), (1, 1, 2, 2), "VALID")

    y = block(x_nchw.astype(jnp.float32), params["w_conv1"], params["b_conv1"])
    y = block(y, params["w_conv2"], params["b_conv2"])
    flat = y.reshape(y.shape[0], -1)                      # PyTorch (C, H, W) flatten
    h1 = jnp.maximum(jnp.dot(flat, params["w_fc1"], precision=hi) + params["b_fc1"], 0.0)
    h2 = jnp.maximum(jnp.dot(h1, params["w_fc2"], precision=hi) + params["b_fc2"], 0.0)
    return jnp.dot(h2, params["w_fc3"], precision=hi) + params["b_fc3"]


if __name__ == "__main__":
    key = jax.random.PRNGKey(0)
    kx, kp = jax.random.split(key)

    B, C, H, W = 2, 3, 20, 20                 # small shapes consistent with the module
    x = jax.random.normal(kx, (B, C, H, W), dtype=jnp.float32)
    params = make_params(kp, H, W)
    packed = pack_params(params, B, H, W)     # one-time weight packing / constant prep

    out = jax.block_until_ready(legos_forward(x, packed))
    assert out.shape == (B, 6) and out.dtype == jnp.float32

    ref = jax.block_until_ready(reference_forward(x, params))
    out_np, ref_np = np.asarray(out), np.asarray(ref)
    assert np.allclose(out_np, ref_np, rtol=5e-2, atol=5e-2), (
        f"kernel/reference mismatch, max abs err = {np.max(np.abs(out_np - ref_np))}")
    print("KERNEL_OK")
</pallas_src>

<mosaic_0001>
module attributes {stable_mosaic.version = 11 : i64} {
  func.func @legos_kernel(%arg0: memref<4x162x12xbf16, #tpu.memory_space<vmem>>, %arg1: memref<12x12xbf16, #tpu.memory_space<vmem>>, %arg2: memref<1x12xf32, #tpu.memory_space<vmem>>, %arg3: memref<512x162xbf16, #tpu.memory_space<vmem>>, %arg4: memref<4x12x24xbf16, #tpu.memory_space<vmem>>, %arg5: memref<1x24xf32, #tpu.memory_space<vmem>>, %arg6: memref<24x384xbf16, #tpu.memory_space<vmem>>, %arg7: memref<32x384xf32, #tpu.memory_space<vmem>>, %arg8: memref<2x32xbf16, #tpu.memory_space<vmem>>, %arg9: memref<384x200xf32, #tpu.memory_space<vmem>>, %arg10: memref<1x200xf32, #tpu.memory_space<vmem>>, %arg11: memref<200x100xf32, #tpu.memory_space<vmem>>, %arg12: memref<1x100xf32, #tpu.memory_space<vmem>>, %arg13: memref<100x6xf32, #tpu.memory_space<vmem>>, %arg14: memref<1x6xf32, #tpu.memory_space<vmem>>, %arg15: memref<2x6xf32, #tpu.memory_space<vmem>>) attributes {dimension_semantics = [], scalar_prefetch = 0 : i64, scratch_operands = 0 : i64, tpu.core_type = #tpu.core_type<tc>} {
    %c0 = arith.constant 0 : index
    %c0_0 = arith.constant 0 : index
    %0 = vector.load %arg1[%c0, %c0_0] : memref<12x12xbf16, #tpu.memory_space<vmem>>, vector<12x12xbf16>
    %c0_1 = arith.constant 0 : index
    %c0_2 = arith.constant 0 : index
    %c0_3 = arith.constant 0 : index
    %1 = vector.load %arg0[%c0_1, %c0_2, %c0_3] : memref<4x162x12xbf16, #tpu.memory_space<vmem>>, vector<1x162x12xbf16>
    %2 = vector.shape_cast %1 : vector<1x162x12xbf16> to vector<162x12xbf16>
    %cst = arith.constant dense<0.000000e+00> : vector<162x12xf32>
    %3 = tpu.matmul %2, %0, %cst {dimension_numbers = #tpu.dot_dimension_numbers<[1], [0], [0], [1], [0, 0, 1, 1], [], []>} : vector<162x12xbf16>, vector<12x12xbf16>, vector<162x12xf32> -> vector<162x12xf32>
    %c1 = arith.constant 1 : index
    %c0_4 = arith.constant 0 : index
    %c0_5 = arith.constant 0 : index
    %4 = vector.load %arg0[%c1, %c0_4, %c0_5] : memref<4x162x12xbf16, #tpu.memory_space<vmem>>, vector<1x162x12xbf16>
    %5 = vector.shape_cast %4 : vector<1x162x12xbf16> to vector<162x12xbf16>
    %cst_6 = arith.constant dense<0.000000e+00> : vector<162x12xf32>
    %6 = tpu.matmul %5, %0, %cst_6 {dimension_numbers = #tpu.dot_dimension_numbers<[1], [0], [0], [1], [0, 0, 1, 1], [], []>} : vector<162x12xbf16>, vector<12x12xbf16>, vector<162x12xf32> -> vector<162x12xf32>
    %7 = arith.maximumf %3, %6 : vector<162x12xf32>
    %c2 = arith.constant 2 : index
    %c0_7 = arith.constant 0 : index
    %c0_8 = arith.constant 0 : index
    %8 = vector.load %arg0[%c2, %c0_7, %c0_8] : memref<4x162x12xbf16, #tpu.memory_space<vmem>>, vector<1x162x12xbf16>
    %9 = vector.shape_cast %8 : vector<1x162x12xbf16> to vector<162x12xbf16>
    %cst_9 = arith.constant dense<0.000000e+00> : vector<162x12xf32>
    %10 = tpu.matmul %9, %0, %cst_9 {dimension_numbers = #tpu.dot_dimension_numbers<[1], [0], [0], [1], [0, 0, 1, 1], [], []>} : vector<162x12xbf16>, vector<12x12xbf16>, vector<162x12xf32> -> vector<162x12xf32>
    %11 = arith.maximumf %7, %10 : vector<162x12xf32>
    %c3 = arith.constant 3 : index
    %c0_10 = arith.constant 0 : index
    %c0_11 = arith.constant 0 : index
    %12 = vector.load %arg0[%c3, %c0_10, %c0_11] : memref<4x162x12xbf16, #tpu.memory_space<vmem>>, vector<1x162x12xbf16>
    %13 = vector.shape_cast %12 : vector<1x162x12xbf16> to vector<162x12xbf16>
    %cst_12 = arith.constant dense<0.000000e+00> : vector<162x12xf32>
    %14 = tpu.matmul %13, %0, %cst_12 {dimension_numbers = #tpu.dot_dimension_numbers<[1], [0], [0], [1], [0, 0, 1, 1], [], []>} : vector<162x12xbf16>, vector<12x12xbf16>, vector<162x12xf32> -> vector<162x12xf32>
    %15 = arith.maximumf %11, %14 : vector<162x12xf32>
    %c0_13 = arith.constant 0 : index
    %c0_14 = arith.constant 0 : index
    %16 = vector.load %arg2[%c0_13, %c0_14] : memref<1x12xf32, #tpu.memory_space<vmem>>, vector<1x12xf32>
    %17 = vector.broadcast %16 : vector<1x12xf32> to vector<162x12xf32>
    %18 = arith.addf %15, %17 : vector<162x12xf32>
    %cst_15 = arith.constant 0.000000e+00 : f32
    %19 = vector.broadcast %cst_15 : f32 to vector<162x12xf32>
    %20 = arith.maximumf %18, %19 : vector<162x12xf32>
    %c0_16 = arith.constant 0 : index
    %c0_17 = arith.constant 0 : index
    %21 = vector.load %arg3[%c0_16, %c0_17] : memref<512x162xbf16, #tpu.memory_space<vmem>>, vector<512x162xbf16>
    %22 = arith.truncf %20 : vector<162x12xf32> to vector<162x12xbf16>
    %cst_18 = arith.constant dense<0.000000e+00> : vector<512x12xf32>
    %23 = tpu.matmul %21, %22, %cst_18 {dimension_numbers = #tpu.dot_dimension_numbers<[1], [0], [0], [1], [0, 0, 1, 1], [], []>} : vector<512x162xbf16>, vector<162x12xbf16>, vector<512x12xf32> -> vector<512x12xf32>
    %24 = vector.extract_strided_slice %23 {offsets = [0, 0], sizes = [128, 12], strides = [1, 1]} : vector<512x12xf32> to vector<128x12xf32>
    %c0_19 = arith.constant 0 : index
    %c0_20 = arith.constant 0 : index
    %c0_21 = arith.constant 0 : index
    %25 = vector.load %arg4[%c0_19, %c0_20, %c0_21] : memref<4x12x24xbf16, #tpu.memory_space<vmem>>, vector<1x12x24xbf16>
    %26 = vector.shape_cast %25 : vector<1x12x24xbf16> to vector<12x24xbf16>
    %27 = arith.truncf %24 : vector<128x12xf32> to vector<128x12xbf16>
    %cst_22 = arith.constant dense<0.000000e+00> : vector<128x24xf32>
    %28 = tpu.matmul %27, %26, %cst_22 {dimension_numbers = #tpu.dot_dimension_numbers<[1], [0], [0], [1], [0, 0, 1, 1], [], []>} : vector<128x12xbf16>, vector<12x24xbf16>, vector<128x24xf32> -> vector<128x24xf32>
    %29 = vector.extract_strided_slice %23 {offsets = [128, 0], sizes = [128, 12], strides = [1, 1]} : vector<512x12xf32> to vector<128x12xf32>
    %c1_23 = arith.constant 1 : index
    %c0_24 = arith.constant 0 : index
    %c0_25 = arith.constant 0 : index
    %30 = vector.load %arg4[%c1_23, %c0_24, %c0_25] : memref<4x12x24xbf16, #tpu.memory_space<vmem>>, vector<1x12x24xbf16>
    %31 = vector.shape_cast %30 : vector<1x12x24xbf16> to vector<12x24xbf16>
    %32 = arith.truncf %29 : vector<128x12xf32> to vector<128x12xbf16>
    %cst_26 = arith.constant dense<0.000000e+00> : vector<128x24xf32>
    %33 = tpu.matmul %32, %31, %cst_26 {dimension_numbers = #tpu.dot_dimension_numbers<[1], [0], [0], [1], [0, 0, 1, 1], [], []>} : vector<128x12xbf16>, vector<12x24xbf16>, vector<128x24xf32> -> vector<128x24xf32>
    %34 = arith.addf %28, %33 : vector<128x24xf32>
    %35 = vector.extract_strided_slice %23 {offsets = [256, 0], sizes = [128, 12], strides = [1, 1]} : vector<512x12xf32> to vector<128x12xf32>
    %c2_27 = arith.constant 2 : index
    %c0_28 = arith.constant 0 : index
    %c0_29 = arith.constant 0 : index
    %36 = vector.load %arg4[%c2_27, %c0_28, %c0_29] : memref<4x12x24xbf16, #tpu.memory_space<vmem>>, vector<1x12x24xbf16>
    %37 = vector.shape_cast %36 : vector<1x12x24xbf16> to vector<12x24xbf16>
    %38 = arith.truncf %35 : vector<128x12xf32> to vector<128x12xbf16>
    %cst_30 = arith.constant dense<0.000000e+00> : vector<128x24xf32>
    %39 = tpu.matmul %38, %37, %cst_30 {dimension_numbers = #tpu.dot_dimension_numbers<[1], [0], [0], [1], [0, 0, 1, 1], [], []>} : vector<128x12xbf16>, vector<12x24xbf16>, vector<128x24xf32> -> vector<128x24xf32>
    %40 = arith.addf %34, %39 : vector<128x24xf32>
    %41 = vector.extract_strided_slice %23 {offsets = [384, 0], sizes = [128, 12], strides = [1, 1]} : vector<512x12xf32> to vector<128x12xf32>
    %c3_31 = arith.constant 3 : index
    %c0_32 = arith.constant 0 : index
    %c0_33 = arith.constant 0 : index
    %42 = vector.load %arg4[%c3_31, %c0_32, %c0_33] : memref<4x12x24xbf16, #tpu.memory_space<vmem>>, vector<1x12x24xbf16>
    %43 = vector.shape_cast %42 : vector<1x12x24xbf16> to vector<12x24xbf16>
    %44 = arith.truncf %41 : vector<128x12xf32> to vector<128x12xbf16>
    %cst_34 = arith.constant dense<0.000000e+00> : vector<128x24xf32>
    %45 = tpu.matmul %44, %43, %cst_34 {dimension_numbers = #tpu.dot_dimension_numbers<[1], [0], [0], [1], [0, 0, 1, 1], [], []>} : vector<128x12xbf16>, vector<12x24xbf16>, vector<128x24xf32> -> vector<128x24xf32>
    %46 = arith.addf %40, %45 : vector<128x24xf32>
    %47 = vector.extract_strided_slice %46 {offsets = [0, 0], sizes = [32, 24], strides = [1, 1]} : vector<128x24xf32> to vector<32x24xf32>
    %48 = vector.extract_strided_slice %46 {offsets = [32, 0], sizes = [32, 24], strides = [1, 1]} : vector<128x24xf32> to vector<32x24xf32>
    %49 = arith.maximumf %47, %48 : vector<32x24xf32>
    %50 = vector.extract_strided_slice %46 {offsets = [64, 0], sizes = [32, 24], strides = [1, 1]} : vector<128x24xf32> to vector<32x24xf32>
    %51 = vector.extract_strided_slice %46 {offsets = [96, 0], sizes = [32, 24], strides = [1, 1]} : vector<128x24xf32> to vector<32x24xf32>
    %52 = arith.maximumf %50, %51 : vector<32x24xf32>
    %53 = arith.maximumf %49, %52 : vector<32x24xf32>
    %c0_35 = arith.constant 0 : index
    %c0_36 = arith.constant 0 : index
    %54 = vector.load %arg5[%c0_35, %c0_36] : memref<1x24xf32, #tpu.memory_space<vmem>>, vector<1x24xf32>
    %55 = vector.broadcast %54 : vector<1x24xf32> to vector<32x24xf32>
    %56 = arith.addf %53, %55 : vector<32x24xf32>
    %cst_37 = arith.constant 0.000000e+00 : f32
    %57 = vector.broadcast %cst_37 : f32 to vector<32x24xf32>
    %58 = arith.maximumf %56, %57 : vector<32x24xf32>
    %c0_38 = arith.constant 0 : index
    %c0_39 = arith.constant 0 : index
    %59 = vector.load %arg6[%c0_38, %c0_39] : memref<24x384xbf16, #tpu.memory_space<vmem>>, vector<24x384xbf16>
    %60 = arith.truncf %58 : vector<32x24xf32> to vector<32x24xbf16>
    %cst_40 = arith.constant dense<0.000000e+00> : vector<32x384xf32>
    %61 = tpu.matmul %60, %59, %cst_40 {dimension_numbers = #tpu.dot_dimension_numbers<[1], [0], [0], [1], [0, 0, 1, 1], [], []>} : vector<32x24xbf16>, vector<24x384xbf16>, vector<32x384xf32> -> vector<32x384xf32>
    %c0_41 = arith.constant 0 : index
    %c0_42 = arith.constant 0 : index
    %62 = vector.load %arg7[%c0_41, %c0_42] : memref<32x384xf32, #tpu.memory_space<vmem>>, vector<32x384xf32>
    %63 = arith.mulf %61, %62 : vector<32x384xf32>
    %c0_43 = arith.constant 0 : index
    %c0_44 = arith.constant 0 : index
    %64 = vector.load %arg8[%c0_43, %c0_44] : memref<2x32xbf16, #tpu.memory_space<vmem>>, vector<2x32xbf16>
    %65 = arith.truncf %63 : vector<32x384xf32> to vector<32x384xbf16>
    %cst_45 = arith.constant dense<0.000000e+00> : vector<2x384xf32>
    %66 = tpu.matmul %64, %65, %cst_45 {dimension_numbers = #tpu.dot_dimension_numbers<[1], [0], [0], [1], [0, 0, 1, 1], [], []>} : vector<2x32xbf16>, vector<32x384xbf16>, vector<2x384xf32> -> vector<2x384xf32>
    %c0_46 = arith.constant 0 : index
    %c0_47 = arith.constant 0 : index
    %67 = vector.load %arg9[%c0_46, %c0_47] : memref<384x200xf32, #tpu.memory_space<vmem>>, vector<384x200xf32>
    %cst_48 = arith.constant dense<0.000000e+00> : vector<2x200xf32>
    %68 = tpu.matmul %66, %67, %cst_48 {dimension_numbers = #tpu.dot_dimension_numbers<[1], [0], [0], [1], [0, 0, 1, 1], [], []>} : vector<2x384xf32>, vector<384x200xf32>, vector<2x200xf32> -> vector<2x200xf32>
    %c0_49 = arith.constant 0 : index
    %c0_50 = arith.constant 0 : index
    %69 = vector.load %arg10[%c0_49, %c0_50] : memref<1x200xf32, #tpu.memory_space<vmem>>, vector<1x200xf32>
    %70 = vector.broadcast %69 : vector<1x200xf32> to vector<2x200xf32>
    %71 = arith.addf %68, %70 : vector<2x200xf32>
    %cst_51 = arith.constant 0.000000e+00 : f32
    %72 = vector.broadcast %cst_51 : f32 to vector<2x200xf32>
    %73 = arith.maximumf %71, %72 : vector<2x200xf32>
    %c0_52 = arith.constant 0 : index
    %c0_53 = arith.constant 0 : index
    %74 = vector.load %arg11[%c0_52, %c0_53] : memref<200x100xf32, #tpu.memory_space<vmem>>, vector<200x100xf32>
    %cst_54 = arith.constant dense<0.000000e+00> : vector<2x100xf32>
    %75 = tpu.matmul %73, %74, %cst_54 {dimension_numbers = #tpu.dot_dimension_numbers<[1], [0], [0], [1], [0, 0, 1, 1], [], []>} : vector<2x200xf32>, vector<200x100xf32>, vector<2x100xf32> -> vector<2x100xf32>
    %c0_55 = arith.constant 0 : index
    %c0_56 = arith.constant 0 : index
    %76 = vector.load %arg12[%c0_55, %c0_56] : memref<1x100xf32, #tpu.memory_space<vmem>>, vector<1x100xf32>
    %77 = vector.broadcast %76 : vector<1x100xf32> to vector<2x100xf32>
    %78 = arith.addf %75, %77 : vector<2x100xf32>
    %cst_57 = arith.constant 0.000000e+00 : f32
    %79 = vector.broadcast %cst_57 : f32 to vector<2x100xf32>
    %80 = arith.maximumf %78, %79 : vector<2x100xf32>
    %c0_58 = arith.constant 0 : index
    %c0_59 = arith.constant 0 : index
    %81 = vector.load %arg13[%c0_58, %c0_59] : memref<100x6xf32, #tpu.memory_space<vmem>>, vector<100x6xf32>
    %cst_60 = arith.constant dense<0.000000e+00> : vector<2x6xf32>
    %82 = tpu.matmul %80, %81, %cst_60 {dimension_numbers = #tpu.dot_dimension_numbers<[1], [0], [0], [1], [0, 0, 1, 1], [], []>} : vector<2x100xf32>, vector<100x6xf32>, vector<2x6xf32> -> vector<2x6xf32>
    %c0_61 = arith.constant 0 : index
    %c0_62 = arith.constant 0 : index
    %83 = vector.load %arg14[%c0_61, %c0_62] : memref<1x6xf32, #tpu.memory_space<vmem>>, vector<1x6xf32>
    %84 = vector.broadcast %83 : vector<1x6xf32> to vector<2x6xf32>
    %85 = arith.addf %82, %84 : vector<2x6xf32>
    %c0_63 = arith.constant 0 : index
    %c0_64 = arith.constant 0 : index
    %86 = vector.load %arg15[%c0_63, %c0_64] : memref<2x6xf32, #tpu.memory_space<vmem>>, vector<2x6xf32>
    tpu.vector_store %arg15[%c0_63, %c0_64], %85 {strides = array<i32>} : memref<2x6xf32, #tpu.memory_space<vmem>>, vector<2x6xf32>,
    return
  }
}

</mosaic_0001>

<llo_original>
// kernel: legos_forward.1
$region0: #{legos_forward.1}
  #allocation0 [shape = 'u32[]', space=smem, size = 0x4, offset = 0x4, fixed_abs, tag = 'smem constant byte address 0x4 - core index']
  #allocation1 [shape = 'u32[72,128]{1,0:T(1,128)}', space=vmem, size = 0x9000, scoped, tag = 'internal scratch']
  %s0 = inlined_call_operand.vmem [shape: bf16[4,162,12], index: 0, kind: input, shape index: {}]
  %s1 = inlined_call_operand.vmem [shape: bf16[12,12], index: 1, kind: input, shape index: {}]
  %s2 = inlined_call_operand.vmem [shape: f32[1,12], index: 2, kind: input, shape index: {}]
  %s3 = inlined_call_operand.vmem [shape: bf16[512,162], index: 3, kind: input, shape index: {}]
  %s4 = inlined_call_operand.vmem [shape: bf16[4,12,24], index: 4, kind: input, shape index: {}]
  %s5 = inlined_call_operand.vmem [shape: f32[1,24], index: 5, kind: input, shape index: {}]
  %s6 = inlined_call_operand.vmem [shape: bf16[24,384], index: 6, kind: input, shape index: {}]
  %s7 = inlined_call_operand.vmem [shape: f32[32,384], index: 7, kind: input, shape index: {}]
  %s8 = inlined_call_operand.vmem [shape: bf16[2,32], index: 8, kind: input, shape index: {}]
  %s9 = inlined_call_operand.vmem [shape: f32[384,200], index: 9, kind: input, shape index: {}]
  %s10 = inlined_call_operand.vmem [shape: f32[1,200], index: 10, kind: input, shape index: {}]
  %s11 = inlined_call_operand.vmem [shape: f32[200,100], index: 11, kind: input, shape index: {}]
  %s12 = inlined_call_operand.vmem [shape: f32[1,100], index: 12, kind: input, shape index: {}]
  %s13 = inlined_call_operand.vmem [shape: f32[100,6], index: 13, kind: input, shape index: {}]
  %s14 = inlined_call_operand.vmem [shape: f32[1,6], index: 14, kind: input, shape index: {}]
  %s15 = inlined_call_operand.hbm [shape: f32[2,6], index: 15, kind: output, shape index: {}]
  %s16 = sld [smem:[#allocation0]]
  $region70: #{legos_forward.1} parent=0
    _
  %s18 = ssub.s32 1, %s16
  %s19 = scalar_select 0, %s18, %s16
  $region1: #{legos_forward.1} parent=0
    #allocation2 [shape = 'u8[1024]{0}', space=vmem, size = 0x400, scoped, tag = 'output window, operand 0, single buffered']
    #allocation3 [shape = 's32[1]{0}', space=sflag, size = 0x4, scoped, tag = 'scoped memory for legos_forward.1']
    %20 = vsyncpa [#allocation3], 0
    // Predicated region
    $region2: #{legos_forward.1} parent=1 // pred_check
      _
    $region3: #{legos_forward.1} parent=1 // pred_check_branch
      %22 = sbr.rel (0) target = $region5
    $region4: #{legos_forward.1} parent=1 // pred_region
      _
    $region5: #{legos_forward.1} parent=1 // pred_fallthru
      _
    // Predicated region
    $region6: #{legos_forward.1} parent=1 // pred_check
      _
    $region7: #{legos_forward.1} parent=1 // pred_check_branch
      %24 = sbr.rel (0) target = $region9
    $region8: #{legos_forward.1} parent=1 // pred_region
      _
    $region9: #{legos_forward.1} parent=1 // pred_fallthru
      _
    // Predicated region
    $region10: #{legos_forward.1} parent=1 // pred_check
      _
    $region11: #{legos_forward.1} parent=1 // pred_check_branch
      %26 = sbr.rel (0) target = $region13
    $region12: #{legos_forward.1} parent=1 // pred_region
      _
    $region13: #{legos_forward.1} parent=1 // pred_fallthru
      _
    // Predicated region
    $region14: #{legos_forward.1} parent=1 // pred_check
      _
    $region15: #{legos_forward.1} parent=1 // pred_check_branch
      %28 = sbr.rel (0) target = $region17
    $region16: #{legos_forward.1} parent=1 // pred_region
      _
    $region17: #{legos_forward.1} parent=1 // pred_fallthru
      _
    // Predicated region
    $region18: #{legos_forward.1} parent=1 // pred_check
      _
    $region19: #{legos_forward.1} parent=1 // pred_check_branch
      %30 = sbr.rel (0) target = $region21
    $region20: #{legos_forward.1} parent=1 // pred_region
      _
    $region21: #{legos_forward.1} parent=1 // pred_fallthru
      _
    // Predicated region
    $region22: #{legos_forward.1} parent=1 // pred_check
      _
    $region23: #{legos_forward.1} parent=1 // pred_check_branch
      %32 = sbr.rel (0) target = $region25
    $region24: #{legos_forward.1} parent=1 // pred_region
      _
    $region25: #{legos_forward.1} parent=1 // pred_fallthru
      _
    // Predicated region
    $region26: #{legos_forward.1} parent=1 // pred_check
      _
    $region27: #{legos_forward.1} parent=1 // pred_check_branch
      %34 = sbr.rel (0) target = $region29
    $region28: #{legos_forward.1} parent=1 // pred_region
      _
    $region29: #{legos_forward.1} parent=1 // pred_fallthru
      _
    // Predicated region
    $region30: #{legos_forward.1} parent=1 // pred_check
      _
    $region31: #{legos_forward.1} parent=1 // pred_check_branch
      %36 = sbr.rel (0) target = $region33
    $region32: #{legos_forward.1} parent=1 // pred_region
      _
    $region33: #{legos_forward.1} parent=1 // pred_fallthru
      _
    // Predicated region
    $region34: #{legos_forward.1} parent=1 // pred_check
      _
    $region35: #{legos_forward.1} parent=1 // pred_check_branch
      %38 = sbr.rel (0) target = $region37
    $region36: #{legos_forward.1} parent=1 // pred_region
      _
    $region37: #{legos_forward.1} parent=1 // pred_fallthru
      _
    // Predicated region
    $region38: #{legos_forward.1} parent=1 // pred_check
      _
    $region39: #{legos_forward.1} parent=1 // pred_check_branch
      %40 = sbr.rel (0) target = $region41
    $region40: #{legos_forward.1} parent=1 // pred_region
      _
    $region41: #{legos_forward.1} parent=1 // pred_fallthru
      _
    // Predicated region
    $region42: #{legos_forward.1} parent=1 // pred_check
      _
    $region43: #{legos_forward.1} parent=1 // pred_check_branch
      %42 = sbr.rel (0) target = $region45
    $region44: #{legos_forward.1} parent=1 // pred_region
      _
    $region45: #{legos_forward.1} parent=1 // pred_fallthru
      _
    // Predicated region
    $region46: #{legos_forward.1} parent=1 // pred_check
      _
    $region47: #{legos_forward.1} parent=1 // pred_check_branch
      %44 = sbr.rel (0) target = $region49
    $region48: #{legos_forward.1} parent=1 // pred_region
      _
    $region49: #{legos_forward.1} parent=1 // pred_fallthru
      _
    // Predicated region
    $region50: #{legos_forward.1} parent=1 // pred_check
      _
    $region51: #{legos_forward.1} parent=1 // pred_check_branch
      %46 = sbr.rel (0) target = $region53
    $region52: #{legos_forward.1} parent=1 // pred_region
      _
    $region53: #{legos_forward.1} parent=1 // pred_fallthru
      _
    // Predicated region
    $region54: #{legos_forward.1} parent=1 // pred_check
      _
    $region55: #{legos_forward.1} parent=1 // pred_check_branch
      %48 = sbr.rel (0) target = $region57
    $region56: #{legos_forward.1} parent=1 // pred_region
      _
    $region57: #{legos_forward.1} parent=1 // pred_fallthru
      _
    // Predicated region
    $region58: #{legos_forward.1} parent=1 // pred_check
      _
    $region59: #{legos_forward.1} parent=1 // pred_check_branch
      %50 = sbr.rel (0) target = $region61
    $region60: #{legos_forward.1} parent=1 // pred_region
      _
    $region61: #{legos_forward.1} parent=1 // pred_fallthru
      _
    %v52 = vld [vmem:[%s1] sm:$0xf]
    %v53 = vld [vmem:[%s1 + $0x4] sm:$0x3]
    %v54 = vld [vmem:[%s0] sm:$0xf]
    %v55 = vld [vmem:[%s0 + $0x4] sm:$0xf]
    %v56 = vld [vmem:[%s0 + $0x8] sm:$0xf]
    %v57 = vld [vmem:[%s0 + $0xc] sm:$0xf]
    %v58 = vld [vmem:[%s0 + $0x10] sm:$0xf]
    %v59 = vld [vmem:[%s0 + $0x14] sm:$0xf]
    %v60 = vld [vmem:[%s0 + $0x18] sm:$0xf]
    %v61 = vld [vmem:[%s0 + $0x1c] sm:$0xf]
    %v62 = vld [vmem:[%s0 + $0x20] sm:$0xf]
    %v63 = vld [vmem:[%s0 + $0x24] sm:$0xf]
    %v64 = vld [vmem:[%s0 + $0x28] sm:$0xf]
    %v65 = vld [vmem:[%s0 + $0x2c] sm:$0xf]
    %v66 = vld [vmem:[%s0 + $0x30] sm:$0xf]
    %v67 = vld [vmem:[%s0 + $0x34] sm:$0xf]
    %v68 = vld [vmem:[%s0 + $0x38] sm:$0xf]
    %v69 = vld [vmem:[%s0 + $0x3c] sm:$0xf]
    %v70 = vld [vmem:[%s0 + $0x40] sm:$0xf]
    %v71 = vld [vmem:[%s0 + $0x44] sm:$0xf]
    %v72 = vld [vmem:[%s0 + $0x48] sm:$0xf]
    %v73 = vld [vmem:[%s0 + $0x4c] sm:$0xf]
    %v74 = vld [vmem:[%s0 + $0x50] sm:$0x1]
    %v96 = vunpack.c.l.b16 %v54
    %v97 = vunpack.c.l.b16 %v55
    %v98 = vunpack.c.l.b16 %v56
    %v99 = vunpack.c.l.b16 %v57
    %v100 = vunpack.c.l.b16 %v58
    %v101 = vunpack.c.l.b16 %v59
    %v102 = vunpack.c.l.b16 %v60
    %v103 = vunpack.c.l.b16 %v61
    %v104 = vunpack.c.l.b16 %v62
    %v105 = vunpack.c.l.b16 %v63
    %v106 = vunpack.c.l.b16 %v64
    %v107 = vunpack.c.l.b16 %v65
    %v108 = vunpack.c.l.b16 %v66
    %v109 = vunpack.c.l.b16 %v67
    %v110 = vunpack.c.l.b16 %v68
    %v111 = vunpack.c.l.b16 %v69
    %v112 = vunpack.c.l.b16 %v70
    %v113 = vunpack.c.l.b16 %v71
    %v114 = vunpack.c.l.b16 %v72
    %v115 = vunpack.c.l.b16 %v73
    %v116 = vunpack.c.l.b16 %v74
    %v117 = vpack.c.b16 %v97, %v96
    %v118 = vpack.c.b16 %v99, %v98
    %v119 = vpack.c.b16 %v101, %v100
    %v120 = vpack.c.b16 %v103, %v102
    %v121 = vpack.c.b16 %v105, %v104
    %v122 = vpack.c.b16 %v107, %v106
    %v123 = vpack.c.b16 %v109, %v108
    %v124 = vpack.c.b16 %v111, %v110
    %v125 = vpack.c.b16 %v113, %v112
    %v126 = vpack.c.b16 %v115, %v114
    %v127 = vpack.c.b16 %v116, %v116
    %v130 = vunpack.c.l.b16 %v52
    %v131 = vunpack.c.l.b16 %v53
    %v132 = vpack.c.b16 %v131, %v130
    %vm133 = vcmask 97280
    %v135 = vsel %vm133, %v117, 0
    %v138 = vsel %vm133, %v118, 0
    %v141 = vsel %vm133, %v119, 0
    %v144 = vsel %vm133, %v120, 0
    %v147 = vsel %vm133, %v121, 0
    %v150 = vsel %vm133, %v122, 0
    %v153 = vsel %vm133, %v123, 0
    %v156 = vsel %vm133, %v124, 0
    %v159 = vsel %vm133, %v125, 0
    %v162 = vsel %vm133, %v126, 0
    %v165 = vsel %vm133, %v127, 0
    %vm167 = vcmask 1045504
    %v169 = vsel %vm167, %v132, 0
    %171 = vmatpush.bf16.msra.mxu0 0
    %172 = vmatpush.bf16.msra.mxu0 0
    %173 = vmatpush.bf16.msra.mxu0 0
    %174 = vmatpush.bf16.msra.mxu0 0
    %175 = vmatpush.bf16.msra.mxu0 0
    %176 = vmatpush.bf16.msra.mxu0 0
    %177 = vmatpush.bf16.msra.mxu0 0
    %178 = vmatpush.bf16.msra.mxu0 %v169
    %179 = vmatmul.bf16.gmra.mxu0 %v135
    %v180 = vpop.f32.mrf.mxu0
    %v181 = vadd.f32 0.0, %v180
    %v182 = vpop.f32.mrf.mxu0
    %v183 = vadd.f32 0.0, %v182
    %184 = vmatmul.bf16.gmra.mxu0 %v138
    %v185 = vpop.f32.mrf.mxu0
    %v186 = vadd.f32 0.0, %v185
    %v187 = vpop.f32.mrf.mxu0
    %v188 = vadd.f32 0.0, %v187
    %189 = vmatmul.bf16.gmra.mxu0 %v141
    %v190 = vpop.f32.mrf.mxu0
    %v191 = vadd.f32 0.0, %v190
    %v192 = vpop.f32.mrf.mxu0
    %v193 = vadd.f32 0.0, %v192
    %194 = vmatmul.bf16.gmra.mxu0 %v144
    %v195 = vpop.f32.mrf.mxu0
    %v196 = vadd.f32 0.0, %v195
    %v197 = vpop.f32.mrf.mxu0
    %v198 = vadd.f32 0.0, %v197
    %199 = vmatmul.bf16.gmra.mxu0 %v147
    %v200 = vpop.f32.mrf.mxu0
    %v201 = vadd.f32 0.0, %v200
    %v202 = vpop.f32.mrf.mxu0
    %v203 = vadd.f32 0.0, %v202
    %204 = vmatmul.bf16.gmra.mxu0 %v150
    %v205 = vpop.f32.mrf.mxu0
    %v206 = vadd.f32 0.0, %v205
    %v207 = vpop.f32.mrf.mxu0
    %v208 = vadd.f32 0.0, %v207
    %209 = vmatmul.bf16.gmra.mxu0 %v153
    %v210 = vpop.f32.mrf.mxu0
    %v211 = vadd.f32 0.0, %v210
    %v212 = vpop.f32.mrf.mxu0
    %v213 = vadd.f32 0.0, %v212
    %214 = vmatmul.bf16.gmra.mxu0 %v156
    %v215 = vpop.f32.mrf.mxu0
    %v216 = vadd.f32 0.0, %v215
    %v217 = vpop.f32.mrf.mxu0
    %v218 = vadd.f32 0.0, %v217
    %219 = vmatmul.bf16.gmra.mxu0 %v159
    %v220 = vpop.f32.mrf.mxu0
    %v221 = vadd.f32 0.0, %v220
    %v222 = vpop.f32.mrf.mxu0
    %v223 = vadd.f32 0.0, %v222
    %224 = vmatmul.bf16.gmra.mxu0 %v162
    %v225 = vpop.f32.mrf.mxu0
    %v226 = vadd.f32 0.0, %v225
    %v227 = vpop.f32.mrf.mxu0
    %v228 = vadd.f32 0.0, %v227
    %229 = vmatmul.bf16.gmra.mxu0 %v165
    %v230 = vpop.f32.mrf.mxu0
    %v231 = vadd.f32 0.0, %v230
    %v232 = vpop.f32.mrf.mxu0
    %233 = vdwg.mxu0
    %s234 = scalar_lea.vmem %s0, 84
    %v235 = vld [vmem:[%s234] sm:$0xf]
    %v236 = vld [vmem:[%s234 + $0x4] sm:$0xf]
    %v237 = vld [vmem:[%s234 + $0x8] sm:$0xf]
    %v238 = vld [vmem:[%s234 + $0xc] sm:$0xf]
    %v239 = vld [vmem:[%s234 + $0x10] sm:$0xf]
    %v240 = vld [vmem:[%s234 + $0x14] sm:$0xf]
    %v241 = vld [vmem:[%s234 + $0x18] sm:$0xf]
    %v242 = vld [vmem:[%s234 + $0x1c] sm:$0xf]
    %v243 = vld [vmem:[%s234 + $0x20] sm:$0xf]
    %v244 = vld [vmem:[%s234 + $0x24] sm:$0xf]
    %v245 = vld [vmem:[%s234 + $0x28] sm:$0xf]
    %v246 = vld [vmem:[%s234 + $0x2c] sm:$0xf]
    %v247 = vld [vmem:[%s234 + $0x30] sm:$0xf]
    %v248 = vld [vmem:[%s234 + $0x34] sm:$0xf]
    %v249 = vld [vmem:[%s234 + $0x38] sm:$0xf]
    %v250 = vld [vmem:[%s234 + $0x3c] sm:$0xf]
    %v251 = vld [vmem:[%s234 + $0x40] sm:$0xf]
    %v252 = vld [vmem:[%s234 + $0x44] sm:$0xf]
    %v253 = vld [vmem:[%s234 + $0x48] sm:$0xf]
    %v254 = vld [vmem:[%s234 + $0x4c] sm:$0xf]
    %v255 = vld [vmem:[%s234 + $0x50] sm:$0x1]
    %v277 = vunpack.c.l.b16 %v235
    %v278 = vunpack.c.l.b16 %v236
    %v279 = vunpack.c.l.b16 %v237
    %v280 = vunpack.c.l.b16 %v238
    %v281 = vunpack.c.l.b16 %v239
    %v282 = vunpack.c.l.b16 %v240
    %v283 = vunpack.c.l.b16 %v241
    %v284 = vunpack.c.l.b16 %v242
    %v285 = vunpack.c.l.b16 %v243
    %v286 = vunpack.c.l.b16 %v244
    %v287 = vunpack.c.l.b16 %v245
    %v288 = vunpack.c.l.b16 %v246
    %v289 = vunpack.c.l.b16 %v247
    %v290 = vunpack.c.l.b16 %v248
    %v291 = vunpack.c.l.b16 %v249
    %v292 = vunpack.c.l.b16 %v250
    %v293 = vunpack.c.l.b16 %v251
    %v294 = vunpack.c.l.b16 %v252
    %v295 = vunpack.c.l.b16 %v253
    %v296 = vunpack.c.l.b16 %v254
    %v297 = vunpack.c.l.b16 %v255
    %v298 = vpack.c.b16 %v278, %v277
    %v299 = vpack.c.b16 %v280, %v279
    %v300 = vpack.c.b16 %v282, %v281
    %v301 = vpack.c.b16 %v284, %v283
    %v302 = vpack.c.b16 %v286, %v285
    %v303 = vpack.c.b16 %v288, %v287
    %v304 = vpack.c.b16 %v290, %v289
    %v305 = vpack.c.b16 %v292, %v291
    %v306 = vpack.c.b16 %v294, %v293
    %v307 = vpack.c.b16 %v296, %v295
    %v308 = vpack.c.b16 %v297, %v297
    %v310 = vsel %vm133, %v298, 0
    %v313 = vsel %vm133, %v299, 0
    %v316 = vsel %vm133, %v300, 0
    %v319 = vsel %vm133, %v301, 0
    %v322 = vsel %vm133, %v302, 0
    %v325 = vsel %vm133, %v303, 0
    %v328 = vsel %vm133, %v304, 0
    %v331 = vsel %vm133, %v305, 0
    %v334 = vsel %vm133, %v306, 0
    %v337 = vsel %vm133, %v307, 0
    %v340 = vsel %vm133, %v308, 0
    %342 = vmatpush.bf16.msra.mxu0 0
    %343 = vmatpush.bf16.msra.mxu0 0
    %344 = vmatpush.bf16.msra.mxu0 0
    %345 = vmatpush.bf16.msra.mxu0 0
    %346 = vmatpush.bf16.msra.mxu0 0
    %347 = vmatpush.bf16.msra.mxu0 0
    %348 = vmatpush.bf16.msra.mxu0 0
    %349 = vmatpush.bf16.msra.mxu0 %v169
    %350 = vmatmul.bf16.gmra.mxu0 %v310
    %v351 = vpop.f32.mrf.mxu0
    %v352 = vadd.f32 0.0, %v351
    %v353 = vpop.f32.mrf.mxu0
    %v354 = vadd.f32 0.0, %v353
    %355 = vmatmul.bf16.gmra.mxu0 %v313
    %v356 = vpop.f32.mrf.mxu0
    %v357 = vadd.f32 0.0, %v356
    %v358 = vpop.f32.mrf.mxu0
    %v359 = vadd.f32 0.0, %v358
    %360 = vmatmul.bf16.gmra.mxu0 %v316
    %v361 = vpop.f32.mrf.mxu0
    %v362 = vadd.f32 0.0, %v361
    %v363 = vpop.f32.mrf.mxu0
    %v364 = vadd.f32 0.0, %v363
    %365 = vmatmul.bf16.gmra.mxu0 %v319
    %v366 = vpop.f32.mrf.mxu0
    %v367 = vadd.f32 0.0, %v366
    %v368 = vpop.f32.mrf.mxu0
    %v369 = vadd.f32 0.0, %v368
    %370 = vmatmul.bf16.gmra.mxu0 %v322
    %v371 = vpop.f32.mrf.mxu0
    %v372 = vadd.f32 0.0, %v371
    %v373 = vpop.f32.mrf.mxu0
    %v374 = vadd.f32 0.0, %v373
    %375 = vmatmul.bf16.gmra.mxu0 %v325
    %v376 = vpop.f32.mrf.mxu0
    %v377 = vadd.f32 0.0, %v376
    %v378 = vpop.f32.mrf.mxu0
    %v379 = vadd.f32 0.0, %v378
    %380 = vmatmul.bf16.gmra.mxu0 %v328
    %v381 = vpop.f32.mrf.mxu0
    %v382 = vadd.f32 0.0, %v381
    %v383 = vpop.f32.mrf.mxu0
    %v384 = vadd.f32 0.0, %v383
    %385 = vmatmul.bf16.gmra.mxu0 %v331
    %v386 = vpop.f32.mrf.mxu0
    %v387 = vadd.f32 0.0, %v386
    %v388 = vpop.f32.mrf.mxu0
    %v389 = vadd.f32 0.0, %v388
    %390 = vmatmul.bf16.gmra.mxu0 %v334
    %v391 = vpop.f32.mrf.mxu0
    %v392 = vadd.f32 0.0, %v391
    %v393 = vpop.f32.mrf.mxu0
    %v394 = vadd.f32 0.0, %v393
    %395 = vmatmul.bf16.gmra.mxu0 %v337
    %v396 = vpop.f32.mrf.mxu0
    %v397 = vadd.f32 0.0, %v396
    %v398 = vpop.f32.mrf.mxu0
    %v399 = vadd.f32 0.0, %v398
    %400 = vmatmul.bf16.gmra.mxu0 %v340
    %v401 = vpop.f32.mrf.mxu0
    %v402 = vadd.f32 0.0, %v401
    %v403 = vpop.f32.mrf.mxu0
    %404 = vdwg.mxu0
    %v405 = vmax.f32 %v181, %v352
    %v406 = vmax.f32 %v183, %v354
    %v407 = vmax.f32 %v186, %v357
    %v408 = vmax.f32 %v188, %v359
    %v409 = vmax.f32 %v191, %v362
    %v410 = vmax.f32 %v193, %v364
    %v411 = vmax.f32 %v196, %v367
    %v412 = vmax.f32 %v198, %v369
    %v413 = vmax.f32 %v201, %v372
    %v414 = vmax.f32 %v203, %v374
    %v415 = vmax.f32 %v206, %v377
    %v416 = vmax.f32 %v208, %v379
    %v417 = vmax.f32 %v211, %v382
    %v418 = vmax.f32 %v213, %v384
    %v419 = vmax.f32 %v216, %v387
    %v420 = vmax.f32 %v218, %v389
    %v421 = vmax.f32 %v221, %v392
    %v422 = vmax.f32 %v223, %v394
    %v423 = vmax.f32 %v226, %v397
    %v424 = vmax.f32 %v228, %v399
    %v425 = vmax.f32 %v231, %v402
    %s426 = scalar_lea.vmem %s0, 168
    %v427 = vld [vmem:[%s426] sm:$0xf]
    %v428 = vld [vmem:[%s426 + $0x4] sm:$0xf]
    %v429 = vld [vmem:[%s426 + $0x8] sm:$0xf]
    %v430 = vld [vmem:[%s426 + $0xc] sm:$0xf]
    %v431 = vld [vmem:[%s426 + $0x10] sm:$0xf]
    %v432 = vld [vmem:[%s426 + $0x14] sm:$0xf]
    %v433 = vld [vmem:[%s426 + $0x18] sm:$0xf]
    %v434 = vld [vmem:[%s426 + $0x1c] sm:$0xf]
    %v435 = vld [vmem:[%s426 + $0x20] sm:$0xf]
    %v436 = vld [vmem:[%s426 + $0x24] sm:$0xf]
    %v437 = vld [vmem:[%s426 + $0x28] sm:$0xf]
    %v438 = vld [vmem:[%s426 + $0x2c] sm:$0xf]
    %v439 = vld [vmem:[%s426 + $0x30] sm:$0xf]
    %v440 = vld [vmem:[%s426 + $0x34] sm:$0xf]
    %v441 = vld [vmem:[%s426 + $0x38] sm:$0xf]
    %v442 = vld [vmem:[%s426 + $0x3c] sm:$0xf]
    %v443 = vld [vmem:[%s426 + $0x40] sm:$0xf]
    %v444 = vld [vmem:[%s426 + $0x44] sm:$0xf]
    %v445 = vld [vmem:[%s426 + $0x48] sm:$0xf]
    %v446 = vld [vmem:[%s426 + $0x4c] sm:$0xf]
    %v447 = vld [vmem:[%s426 + $0x50] sm:$0x1]
    %v469 = vunpack.c.l.b16 %v427
    %v470 = vunpack.c.l.b16 %v428
    %v471 = vunpack.c.l.b16 %v429
    %v472 = vunpack.c.l.b16 %v430
    %v473 = vunpack.c.l.b16 %v431
    %v474 = vunpack.c.l.b16 %v432
    %v475 = vunpack.c.l.b16 %v433
    %v476 = vunpack.c.l.b16 %v434
    %v477 = vunpack.c.l.b16 %v435
    %v478 = vunpack.c.l.b16 %v436
    %v479 = vunpack.c.l.b16 %v437
    %v480 = vunpack.c.l.b16 %v438
    %v481 = vunpack.c.l.b16 %v439
    %v482 = vunpack.c.l.b16 %v440
    %v483 = vunpack.c.l.b16 %v441
    %v484 = vunpack.c.l.b16 %v442
    %v485 = vunpack.c.l.b16 %v443
    %v486 = vunpack.c.l.b16 %v444
    %v487 = vunpack.c.l.b16 %v445
    %v488 = vunpack.c.l.b16 %v446
    %v489 = vunpack.c.l.b16 %v447
    %v490 = vpack.c.b16 %v470, %v469
    %v491 = vpack.c.b16 %v472, %v471
    %v492 = vpack.c.b16 %v474, %v473
    %v493 = vpack.c.b16 %v476, %v475
    %v494 = vpack.c.b16 %v478, %v477
    %v495 = vpack.c.b16 %v480, %v479
    %v496 = vpack.c.b16 %v482, %v481
    %v497 = vpack.c.b16 %v484, %v483
    %v498 = vpack.c.b16 %v486, %v485
    %v499 = vpack.c.b16 %v488, %v487
    %v500 = vpack.c.b16 %v489, %v489
    %v502 = vsel %vm133, %v490, 0
    %v505 = vsel %vm133, %v491, 0
    %v508 = vsel %vm133, %v492, 0
    %v511 = vsel %vm133, %v493, 0
    %v514 = vsel %vm133, %v494, 0
    %v517 = vsel %vm133, %v495, 0
    %v520 = vsel %vm133, %v496, 0
    %v523 = vsel %vm133, %v497, 0
    %v526 = vsel %vm133, %v498, 0
    %v529 = vsel %vm133, %v499, 0
    %v532 = vsel %vm133, %v500, 0
    %534 = vmatpush.bf16.msra.mxu0 0
    %535 = vmatpush.bf16.msra.mxu0 0
    %536 = vmatpush.bf16.msra.mxu0 0
    %537 = vmatpush.bf16.msra.mxu0 0
    %538 = vmatpush.bf16.msra.mxu0 0
    %539 = vmatpush.bf16.msra.mxu0 0
    %540 = vmatpush.bf16.msra.mxu0 0
    %541 = vmatpush.bf16.msra.mxu0 %v169
    %542 = vmatmul.bf16.gmra.mxu0 %v502
    %v543 = vpop.f32.mrf.mxu0
    %v544 = vadd.f32 0.0, %v543
    %v545 = vpop.f32.mrf.mxu0
    %v546 = vadd.f32 0.0, %v545
    %547 = vmatmul.bf16.gmra.mxu0 %v505
    %v548 = vpop.f32.mrf.mxu0
    %v549 = vadd.f32 0.0, %v548
    %v550 = vpop.f32.mrf.mxu0
    %v551 = vadd.f32 0.0, %v550
    %552 = vmatmul.bf16.gmra.mxu0 %v508
    %v553 = vpop.f32.mrf.mxu0
    %v554 = vadd.f32 0.0, %v553
    %v555 = vpop.f32.mrf.mxu0
    %v556 = vadd.f32 0.0, %v555
    %557 = vmatmul.bf16.gmra.mxu0 %v511
    %v558 = vpop.f32.mrf.mxu0
    %v559 = vadd.f32 0.0, %v558
    %v560 = vpop.f32.mrf.mxu0
    %v561 = vadd.f32 0.0, %v560
    %562 = vmatmul.bf16.gmra.mxu0 %v514
    %v563 = vpop.f32.mrf.mxu0
    %v564 = vadd.f32 0.0, %v563
    %v565 = vpop.f32.mrf.mxu0
    %v566 = vadd.f32 0.0, %v565
    %567 = vmatmul.bf16.gmra.mxu0 %v517
    %v568 = vpop.f32.mrf.mxu0
    %v569 = vadd.f32 0.0, %v568
    %v570 = vpop.f32.mrf.mxu0
    %v571 = vadd.f32 0.0, %v570
    %572 = vmatmul.bf16.gmra.mxu0 %v520
    %v573 = vpop.f32.mrf.mxu0
    %v574 = vadd.f32 0.0, %v573
    %v575 = vpop.f32.mrf.mxu0
    %v576 = vadd.f32 0.0, %v575
    %577 = vmatmul.bf16.gmra.mxu0 %v523
    %v578 = vpop.f32.mrf.mxu0
    %v579 = vadd.f32 0.0, %v578
    %v580 = vpop.f32.mrf.mxu0
    %v581 = vadd.f32 0.0, %v580
    %582 = vmatmul.bf16.gmra.mxu0 %v526
    %v583 = vpop.f32.mrf.mxu0
    %v584 = vadd.f32 0.0, %v583
    %v585 = vpop.f32.mrf.mxu0
    %v586 = vadd.f32 0.0, %v585
    %587 = vmatmul.bf16.gmra.mxu0 %v529
    %v588 = vpop.f32.mrf.mxu0
    %v589 = vadd.f32 0.0, %v588
    %v590 = vpop.f32.mrf.mxu0
    %v591 = vadd.f32 0.0, %v590
    %592 = vmatmul.bf16.gmra.mxu0 %v532
    %v593 = vpop.f32.mrf.mxu0
    %v594 = vadd.f32 0.0, %v593
    %v595 = vpop.f32.mrf.mxu0
    %596 = vdwg.mxu0
    %v597 = vmax.f32 %v405, %v544
    %v598 = vmax.f32 %v406, %v546
    %v599 = vmax.f32 %v407, %v549
    %v600 = vmax.f32 %v408, %v551
    %v601 = vmax.f32 %v409, %v554
    %v602 = vmax.f32 %v410, %v556
    %v603 = vmax.f32 %v411, %v559
    %v604 = vmax.f32 %v412, %v561
    %v605 = vmax.f32 %v413, %v564
    %v606 = vmax.f32 %v414, %v566
    %v607 = vmax.f32 %v415, %v569
    %v608 = vmax.f32 %v416, %v571
    %v609 = vmax.f32 %v417, %v574
    %v610 = vmax.f32 %v418, %v576
    %v611 = vmax.f32 %v419, %v579
    %v612 = vmax.f32 %v420, %v581
    %v613 = vmax.f32 %v421, %v584
    %v614 = vmax.f32 %v422, %v586
    %v615 = vmax.f32 %v423, %v589
    %v616 = vmax.f32 %v424, %v591
    %v617 = vmax.f32 %v425, %v594
    %s618 = scalar_lea.vmem %s0, 252
    %v619 = vld [vmem:[%s618] sm:$0xf]
    %v620 = vld [vmem:[%s618 + $0x4] sm:$0xf]
    %v621 = vld [vmem:[%s618 + $0x8] sm:$0xf]
    %v622 = vld [vmem:[%s618 + $0xc] sm:$0xf]
    %v623 = vld [vmem:[%s618 + $0x10] sm:$0xf]
    %v624 = vld [vmem:[%s618 + $0x14] sm:$0xf]
    %v625 = vld [vmem:[%s618 + $0x18] sm:$0xf]
    %v626 = vld [vmem:[%s618 + $0x1c] sm:$0xf]
    %v627 = vld [vmem:[%s618 + $0x20] sm:$0xf]
    %v628 = vld [vmem:[%s618 + $0x24] sm:$0xf]
    %v629 = vld [vmem:[%s618 + $0x28] sm:$0xf]
    %v630 = vld [vmem:[%s618 + $0x2c] sm:$0xf]
    %v631 = vld [vmem:[%s618 + $0x30] sm:$0xf]
    %v632 = vld [vmem:[%s618 + $0x34] sm:$0xf]
    %v633 = vld [vmem:[%s618 + $0x38] sm:$0xf]
    %v634 = vld [vmem:[%s618 + $0x3c] sm:$0xf]
    %v635 = vld [vmem:[%s618 + $0x40] sm:$0xf]
    %v636 = vld [vmem:[%s618 + $0x44] sm:$0xf]
    %v637 = vld [vmem:[%s618 + $0x48] sm:$0xf]
    %v638 = vld [vmem:[%s618 + $0x4c] sm:$0xf]
    %v639 = vld [vmem:[%s618 + $0x50] sm:$0x1]
    %v661 = vunpack.c.l.b16 %v619
    %v662 = vunpack.c.l.b16 %v620
    %v663 = vunpack.c.l.b16 %v621
    %v664 = vunpack.c.l.b16 %v622
    %v665 = vunpack.c.l.b16 %v623
    %v666 = vunpack.c.l.b16 %v624
    %v667 = vunpack.c.l.b16 %v625
    %v668 = vunpack.c.l.b16 %v626
    %v669 = vunpack.c.l.b16 %v627
    %v670 = vunpack.c.l.b16 %v628
    %v671 = vunpack.c.l.b16 %v629
    %v672 = vunpack.c.l.b16 %v630
    %v673 = vunpack.c.l.b16 %v631
    %v674 = vunpack.c.l.b16 %v632
    %v675 = vunpack.c.l.b16 %v633
    %v676 = vunpack.c.l.b16 %v634
    %v677 = vunpack.c.l.b16 %v635
    %v678 = vunpack.c.l.b16 %v636
    %v679 = vunpack.c.l.b16 %v637
    %v680 = vunpack.c.l.b16 %v638
    %v681 = vunpack.c.l.b16 %v639
    %v682 = vpack.c.b16 %v662, %v661
    %v683 = vpack.c.b16 %v664, %v663
    %v684 = vpack.c.b16 %v666, %v665
    %v685 = vpack.c.b16 %v668, %v667
    %v686 = vpack.c.b16 %v670, %v669
    %v687 = vpack.c.b16 %v672, %v671
    %v688 = vpack.c.b16 %v674, %v673
    %v689 = vpack.c.b16 %v676, %v675
    %v690 = vpack.c.b16 %v678, %v677
    %v691 = vpack.c.b16 %v680, %v679
    %v692 = vpack.c.b16 %v681, %v681
    %v694 = vsel %vm133, %v682, 0
    %v697 = vsel %vm133, %v683, 0
    %v700 = vsel %vm133, %v684, 0
    %v703 = vsel %vm133, %v685, 0
    %v706 = vsel %vm133, %v686, 0
    %v709 = vsel %vm133, %v687, 0
    %v712 = vsel %vm133, %v688, 0
    %v715 = vsel %vm133, %v689, 0
    %v718 = vsel %vm133, %v690, 0
    %v721 = vsel %vm133, %v691, 0
    %v724 = vsel %vm133, %v692, 0
    %726 = vmatpush.bf16.msra.mxu0 0
    %727 = vmatpush.bf16.msra.mxu0 0
    %728 = vmatpush.bf16.msra.mxu0 0
    %729 = vmatpush.bf16.msra.mxu0 0
    %730 = vmatpush.bf16.msra.mxu0 0
    %731 = vmatpush.bf16.msra.mxu0 0
    %732 = vmatpush.bf16.msra.mxu0 0
    %733 = vmatpush.bf16.msra.mxu0 %v169
    %734 = vmatmul.bf16.gmra.mxu0 %v694
    %v735 = vpop.f32.mrf.mxu0
    %v736 = vadd.f32 0.0, %v735
    %v737 = vpop.f32.mrf.mxu0
    %v738 = vadd.f32 0.0, %v737
    %739 = vmatmul.bf16.gmra.mxu0 %v697
    %v740 = vpop.f32.mrf.mxu0
    %v741 = vadd.f32 0.0, %v740
    %v742 = vpop.f32.mrf.mxu0
    %v743 = vadd.f32 0.0, %v742
    %744 = vmatmul.bf16.gmra.mxu0 %v700
    %v745 = vpop.f32.mrf.mxu0
    %v746 = vadd.f32 0.0, %v745
    %v747 = vpop.f32.mrf.mxu0
    %v748 = vadd.f32 0.0, %v747
    %749 = vmatmul.bf16.gmra.mxu0 %v703
    %v750 = vpop.f32.mrf.mxu0
    %v751 = vadd.f32 0.0, %v750
    %v752 = vpop.f32.mrf.mxu0
    %v753 = vadd.f32 0.0, %v752
    %754 = vmatmul.bf16.gmra.mxu0 %v706
    %v755 = vpop.f32.mrf.mxu0
    %v756 = vadd.f32 0.0, %v755
    %v757 = vpop.f32.mrf.mxu0
    %v758 = vadd.f32 0.0, %v757
    %759 = vmatmul.bf16.gmra.mxu0 %v709
    %v760 = vpop.f32.mrf.mxu0
    %v761 = vadd.f32 0.0, %v760
    %v762 = vpop.f32.mrf.mxu0
    %v763 = vadd.f32 0.0, %v762
    %764 = vmatmul.bf16.gmra.mxu0 %v712
    %v765 = vpop.f32.mrf.mxu0
    %v766 = vadd.f32 0.0, %v765
    %v767 = vpop.f32.mrf.mxu0
    %v768 = vadd.f32 0.0, %v767
    %769 = vmatmul.bf16.gmra.mxu0 %v715
    %v770 = vpop.f32.mrf.mxu0
    %v771 = vadd.f32 0.0, %v770
    %v772 = vpop.f32.mrf.mxu0
    %v773 = vadd.f32 0.0, %v772
    %774 = vmatmul.bf16.gmra.mxu0 %v718
    %v775 = vpop.f32.mrf.mxu0
    %v776 = vadd.f32 0.0, %v775
    %v777 = vpop.f32.mrf.mxu0
    %v778 = vadd.f32 0.0, %v777
    %779 = vmatmul.bf16.gmra.mxu0 %v721
    %v780 = vpop.f32.mrf.mxu0
    %v781 = vadd.f32 0.0, %v780
    %v782 = vpop.f32.mrf.mxu0
    %v783 = vadd.f32 0.0, %v782
    %784 = vmatmul.bf16.gmra.mxu0 %v724
    %v785 = vpop.f32.mrf.mxu0
    %v786 = vadd.f32 0.0, %v785
    %v787 = vpop.f32.mrf.mxu0
    %788 = vdwg.mxu0
    %v789 = vmax.f32 %v597, %v736
    %v790 = vmax.f32 %v598, %v738
    %v791 = vmax.f32 %v599, %v741
    %v792 = vmax.f32 %v600, %v743
    %v793 = vmax.f32 %v601, %v746
    %v794 = vmax.f32 %v602, %v748
    %v795 = vmax.f32 %v603, %v751
    %v796 = vmax.f32 %v604, %v753
    %v797 = vmax.f32 %v605, %v756
    %v798 = vmax.f32 %v606, %v758
    %v799 = vmax.f32 %v607, %v761
    %v800 = vmax.f32 %v608, %v763
    %v801 = vmax.f32 %v609, %v766
    %v802 = vmax.f32 %v610, %v768
    %v803 = vmax.f32 %v611, %v771
    %v804 = vmax.f32 %v612, %v773
    %v805 = vmax.f32 %v613, %v776
    %v806 = vmax.f32 %v614, %v778
    %v807 = vmax.f32 %v615, %v781
    %v808 = vmax.f32 %v616, %v783
    %v809 = vmax.f32 %v617, %v786
    %v810 = vld [vmem:[%s2] sm:$0x1]
    %v812 = vperm.slane %v810, 0
    %v814 = vadd.f32 %v789, %v812
    %v815 = vadd.f32 %v790, %v812
    %v816 = vadd.f32 %v791, %v812
    %v817 = vadd.f32 %v792, %v812
    %v818 = vadd.f32 %v793, %v812
    %v819 = vadd.f32 %v794, %v812
    %v820 = vadd.f32 %v795, %v812
    %v821 = vadd.f32 %v796, %v812
    %v822 = vadd.f32 %v797, %v812
    %v823 = vadd.f32 %v798, %v812
    %v824 = vadd.f32 %v799, %v812
    %v825 = vadd.f32 %v800, %v812
    %v826 = vadd.f32 %v801, %v812
    %v827 = vadd.f32 %v802, %v812
    %v828 = vadd.f32 %v803, %v812
    %v829 = vadd.f32 %v804, %v812
    %v830 = vadd.f32 %v805, %v812
    %v831 = vadd.f32 %v806, %v812
    %v832 = vadd.f32 %v807, %v812
    %v833 = vadd.f32 %v808, %v812
    %v834 = vadd.f32 %v809, %v812
    %v835 = vmax.f32 %v814, 0.0
    %v836 = vmax.f32 %v815, 0.0
    %v837 = vmax.f32 %v816, 0.0
    %v838 = vmax.f32 %v817, 0.0
    %v839 = vmax.f32 %v818, 0.0
    %v840 = vmax.f32 %v819, 0.0
    %v841 = vmax.f32 %v820, 0.0
    %v842 = vmax.f32 %v821, 0.0
    %v843 = vmax.f32 %v822, 0.0
    %v844 = vmax.f32 %v823, 0.0
    %v845 = vmax.f32 %v824, 0.0
    %v846 = vmax.f32 %v825, 0.0
    %v847 = vmax.f32 %v826, 0.0
    %v848 = vmax.f32 %v827, 0.0
    %v849 = vmax.f32 %v828, 0.0
    %v850 = vmax.f32 %v829, 0.0
    %v851 = vmax.f32 %v830, 0.0
    %v852 = vmax.f32 %v831, 0.0
    %v853 = vmax.f32 %v832, 0.0
    %v854 = vmax.f32 %v833, 0.0
    %v855 = vmax.f32 %v834, 0.0
    %v856 = vld [vmem:[%s3] sm:$0xff]
    %v857 = vld [vmem:[%s3 + $0x8] sm:$0xff]
    %v858 = vld [vmem:[%s3 + $0x10] sm:$0xff]
    %v859 = vld [vmem:[%s3 + $0x18] sm:$0xff]
    %v860 = vld [vmem:[%s3 + $0x20] sm:$0xff]
    %v861 = vld [vmem:[%s3 + $0x28] sm:$0xff]
    %v862 = vld [vmem:[%s3 + $0x30] sm:$0xff]
    %v863 = vld [vmem:[%s3 + $0x38] sm:$0xff]
    %v864 = vld [vmem:[%s3 + $0x40] sm:$0xff]
    %v865 = vld [vmem:[%s3 + $0x48] sm:$0xff]
    %v866 = vld [vmem:[%s3 + $0x50] sm:$0xff]
    %v867 = vld [vmem:[%s3 + $0x58] sm:$0xff]
    %v868 = vld [vmem:[%s3 + $0x60] sm:$0xff]
    %v869 = vld [vmem:[%s3 + $0x68] sm:$0xff]
    %v870 = vld [vmem:[%s3 + $0x70] sm:$0xff]
    %v871 = vld [vmem:[%s3 + $0x78] sm:$0xff]
    %v872 = vld [vmem:[%s3 + $0x80] sm:$0xff]
    %v873 = vld [vmem:[%s3 + $0x88] sm:$0xff]
    %v874 = vld [vmem:[%s3 + $0x90] sm:$0xff]
    %v875 = vld [vmem:[%s3 + $0x98] sm:$0xff]
    %v876 = vld [vmem:[%s3 + $0xa0] sm:$0xff]
    %v877 = vld [vmem:[%s3 + $0xa8] sm:$0xff]
    %v878 = vld [vmem:[%s3 + $0xb0] sm:$0xff]
    %v879 = vld [vmem:[%s3 + $0xb8] sm:$0xff]
    %v880 = vld [vmem:[%s3 + $0xc0] sm:$0xff]
    %v881 = vld [vmem:[%s3 + $0xc8] sm:$0xff]
    %v882 = vld [vmem:[%s3 + $0xd0] sm:$0xff]
    %v883 = vld [vmem:[%s3 + $0xd8] sm:$0xff]
    %v884 = vld [vmem:[%s3 + $0xe0] sm:$0xff]
    %v885 = vld [vmem:[%s3 + $0xe8] sm:$0xff]
    %v886 = vld [vmem:[%s3 + $0xf0] sm:$0xff]
    %v887 = vld [vmem:[%s3 + $0xf8] sm:$0xff]
    %v888 = vld [vmem:[%s3 + $0x100] sm:$0xff]
    %v889 = vld [vmem:[%s3 + $0x108] sm:$0xff]
    %v890 = vld [vmem:[%s3 + $0x110] sm:$0xff]
    %v891 = vld [vmem:[%s3 + $0x118] sm:$0xff]
    %v892 = vld [vmem:[%s3 + $0x120] sm:$0xff]
    %v893 = vld [vmem:[%s3 + $0x128] sm:$0xff]
    %v894 = vld [vmem:[%s3 + $0x130] sm:$0xff]
    %v895 = vld [vmem:[%s3 + $0x138] sm:$0xff]
    %v896 = vld [vmem:[%s3 + $0x140] sm:$0xff]
    %v897 = vld [vmem:[%s3 + $0x148] sm:$0xff]
    %v898 = vld [vmem:[%s3 + $0x150] sm:$0xff]
    %v899 = vld [vmem:[%s3 + $0x158] sm:$0xff]
    %v900 = vld [vmem:[%s3 + $0x160] sm:$0xff]
    %v901 = vld [vmem:[%s3 + $0x168] sm:$0xff]
    %v902 = vld [vmem:[%s3 + $0x170] sm:$0xff]
    %v903 = vld [vmem:[%s3 + $0x178] sm:$0xff]
    %v904 = vld [vmem:[%s3 + $0x180] sm:$0xff]
    %v905 = vld [vmem:[%s3 + $0x188] sm:$0xff]
    %v906 = vld [vmem:[%s3 + $0x190] sm:$0xff]
    %v907 = vld [vmem:[%s3 + $0x198] sm:$0xff]
    %v908 = vld [vmem:[%s3 + $0x1a0] sm:$0xff]
    %v909 = vld [vmem:[%s3 + $0x1a8] sm:$0xff]
    %v910 = vld [vmem:[%s3 + $0x1b0] sm:$0xff]
    %v911 = vld [vmem:[%s3 + $0x1b8] sm:$0xff]
    %v912 = vld [vmem:[%s3 + $0x1c0] sm:$0xff]
    %v913 = vld [vmem:[%s3 + $0x1c8] sm:$0xff]
    %v914 = vld [vmem:[%s3 + $0x1d0] sm:$0xff]
    %v915 = vld [vmem:[%s3 + $0x1d8] sm:$0xff]
    %v916 = vld [vmem:[%s3 + $0x1e0] sm:$0xff]
    %v917 = vld [vmem:[%s3 + $0x1e8] sm:$0xff]
    %v918 = vld [vmem:[%s3 + $0x1f0] sm:$0xff]
    %v919 = vld [vmem:[%s3 + $0x1f8] sm:$0xff]
    %v920 = vpack.c.bf16 %v836, %v835
    %v921 = vpack.c.bf16 %v838, %v837
    %v922 = vpack.c.bf16 %v840, %v839
    %v923 = vpack.c.bf16 %v842, %v841
    %v924 = vpack.c.bf16 %v844, %v843
    %v925 = vpack.c.bf16 %v846, %v845
    %v926 = vpack.c.bf16 %v848, %v847
    %v927 = vpack.c.bf16 %v850, %v849
    %v928 = vpack.c.bf16 %v852, %v851
    %v929 = vpack.c.bf16 %v854, %v853
    %v930 = vpack.c.bf16 %v855, %v855
    %v995 = vunpack.c.l.b16 %v856
    %v996 = vunpack.c.h.b16 %v856
    %v997 = vunpack.c.l.b16 %v857
    %v998 = vunpack.c.h.b16 %v857
    %v999 = vunpack.c.l.b16 %v858
    %v1000 = vunpack.c.h.b16 %v858
    %v1001 = vunpack.c.l.b16 %v859
    %v1002 = vunpack.c.h.b16 %v859
    %v1003 = vunpack.c.l.b16 %v860
    %v1004 = vunpack.c.h.b16 %v860
    %v1005 = vunpack.c.l.b16 %v861
    %v1006 = vunpack.c.h.b16 %v861
    %v1007 = vunpack.c.l.b16 %v862
    %v1008 = vunpack.c.h.b16 %v862
    %v1009 = vunpack.c.l.b16 %v863
    %v1010 = vunpack.c.h.b16 %v863
    %v1011 = vunpack.c.l.b16 %v864
    %v1012 = vunpack.c.h.b16 %v864
    %v1013 = vunpack.c.l.b16 %v865
    %v1014 = vunpack.c.h.b16 %v865
    %v1015 = vunpack.c.l.b16 %v866
    %v1016 = vunpack.c.h.b16 %v866
    %v1017 = vunpack.c.l.b16 %v867
    %v1018 = vunpack.c.h.b16 %v867
    %v1019 = vunpack.c.l.b16 %v868
    %v1020 = vunpack.c.h.b16 %v868
    %v1021 = vunpack.c.l.b16 %v869
    %v1022 = vunpack.c.h.b16 %v869
    %v1023 = vunpack.c.l.b16 %v870
    %v1024 = vunpack.c.h.b16 %v870
    %v1025 = vunpack.c.l.b16 %v871
    %v1026 = vunpack.c.h.b16 %v871
    %v1027 = vunpack.c.l.b16 %v872
    %v1028 = vunpack.c.h.b16 %v872
    %v1029 = vunpack.c.l.b16 %v873
    %v1030 = vunpack.c.h.b16 %v873
    %v1031 = vunpack.c.l.b16 %v874
    %v1032 = vunpack.c.h.b16 %v874
    %v1033 = vunpack.c.l.b16 %v875
    %v1034 = vunpack.c.h.b16 %v875
    %v1035 = vunpack.c.l.b16 %v876
    %v1036 = vunpack.c.h.b16 %v876
    %v1037 = vunpack.c.l.b16 %v877
    %v1038 = vunpack.c.h.b16 %v877
    %v1039 = vunpack.c.l.b16 %v878
    %v1040 = vunpack.c.h.b16 %v878
    %v1041 = vunpack.c.l.b16 %v879
    %v1042 = vunpack.c.h.b16 %v879
    %v1043 = vunpack.c.l.b16 %v880
    %v1044 = vunpack.c.h.b16 %v880
    %v1045 = vunpack.c.l.b16 %v881
    %v1046 = vunpack.c.h.b16 %v881
    %v1047 = vunpack.c.l.b16 %v882
    %v1048 = vunpack.c.h.b16 %v882
    %v1049 = vunpack.c.l.b16 %v883
    %v1050 = vunpack.c.h.b16 %v883
    %v1051 = vunpack.c.l.b16 %v884
    %v1052 = vunpack.c.h.b16 %v884
    %v1053 = vunpack.c.l.b16 %v885
    %v1054 = vunpack.c.h.b16 %v885
    %v1055 = vunpack.c.l.b16 %v886
    %v1056 = vunpack.c.h.b16 %v886
    %v1057 = vunpack.c.l.b16 %v887
    %v1058 = vunpack.c.h.b16 %v887
    %v1059 = vunpack.c.l.b16 %v888
    %v1060 = vunpack.c.h.b16 %v888
    %v1061 = vunpack.c.l.b16 %v889
    %v1062 = vunpack.c.h.b16 %v889
    %v1063 = vunpack.c.l.b16 %v890
    %v1064 = vunpack.c.h.b16 %v890
    %v1065 = vunpack.c.l.b16 %v891
    %v1066 = vunpack.c.h.b16 %v891
    %v1067 = vunpack.c.l.b16 %v892
    %v1068 = vunpack.c.h.b16 %v892
    %v1069 = vunpack.c.l.b16 %v893
    %v1070 = vunpack.c.h.b16 %v893
    %v1071 = vunpack.c.l.b16 %v894
    %v1072 = vunpack.c.h.b16 %v894
    %v1073 = vunpack.c.l.b16 %v895
    %v1074 = vunpack.c.h.b16 %v895
    %v1075 = vunpack.c.l.b16 %v896
    %v1076 = vunpack.c.h.b16 %v896
    %v1077 = vunpack.c.l.b16 %v897
    %v1078 = vunpack.c.h.b16 %v897
    %v1079 = vunpack.c.l.b16 %v898
    %v1080 = vunpack.c.h.b16 %v898
    %v1081 = vunpack.c.l.b16 %v899
    %v1082 = vunpack.c.h.b16 %v899
    %v1083 = vunpack.c.l.b16 %v900
    %v1084 = vunpack.c.h.b16 %v900
    %v1085 = vunpack.c.l.b16 %v901
    %v1086 = vunpack.c.h.b16 %v901
    %v1087 = vunpack.c.l.b16 %v902
    %v1088 = vunpack.c.h.b16 %v902
    %v1089 = vunpack.c.l.b16 %v903
    %v1090 = vunpack.c.h.b16 %v903
    %v1091 = vunpack.c.l.b16 %v904
    %v1092 = vunpack.c.h.b16 %v904
    %v1093 = vunpack.c.l.b16 %v905
    %v1094 = vunpack.c.h.b16 %v905
    %v1095 = vunpack.c.l.b16 %v906
    %v1096 = vunpack.c.h.b16 %v906
    %v1097 = vunpack.c.l.b16 %v907
    %v1098 = vunpack.c.h.b16 %v907
    %v1099 = vunpack.c.l.b16 %v908
    %v1100 = vunpack.c.h.b16 %v908
    %v1101 = vunpack.c.l.b16 %v909
    %v1102 = vunpack.c.h.b16 %v909
    %v1103 = vunpack.c.l.b16 %v910
    %v1104 = vunpack.c.h.b16 %v910
    %v1105 = vunpack.c.l.b16 %v911
    %v1106 = vunpack.c.h.b16 %v911
    %v1107 = vunpack.c.l.b16 %v912
    %v1108 = vunpack.c.h.b16 %v912
    %v1109 = vunpack.c.l.b16 %v913
    %v1110 = vunpack.c.h.b16 %v913
    %v1111 = vunpack.c.l.b16 %v914
    %v1112 = vunpack.c.h.b16 %v914
    %v1113 = vunpack.c.l.b16 %v915
    %v1114 = vunpack.c.h.b16 %v915
    %v1115 = vunpack.c.l.b16 %v916
    %v1116 = vunpack.c.h.b16 %v916
    %v1117 = vunpack.c.l.b16 %v917
    %v1118 = vunpack.c.h.b16 %v917
    %v1119 = vunpack.c.l.b16 %v918
    %v1120 = vunpack.c.h.b16 %v918
    %v1121 = vunpack.c.l.b16 %v919
    %v1122 = vunpack.c.h.b16 %v919
    %v1123 = vpack.c.b16 %v997, %v995
    %v1124 = vpack.c.b16 %v998, %v996
    %v1125 = vpack.c.b16 %v1001, %v999
    %v1126 = vpack.c.b16 %v1002, %v1000
    %v1127 = vpack.c.b16 %v1005, %v1003
    %v1128 = vpack.c.b16 %v1006, %v1004
    %v1129 = vpack.c.b16 %v1009, %v1007
    %v1130 = vpack.c.b16 %v1010, %v1008
    %v1131 = vpack.c.b16 %v1013, %v1011
    %v1132 = vpack.c.b16 %v1014, %v1012
    %v1133 = vpack.c.b16 %v1017, %v1015
    %v1134 = vpack.c.b16 %v1018, %v1016
    %v1135 = vpack.c.b16 %v1021, %v1019
    %v1136 = vpack.c.b16 %v1022, %v1020
    %v1137 = vpack.c.b16 %v1025, %v1023
    %v1138 = vpack.c.b16 %v1026, %v1024
    %v1139 = vpack.c.b16 %v1029, %v1027
    %v1140 = vpack.c.b16 %v1030, %v1028
    %v1141 = vpack.c.b16 %v1033, %v1031
    %v1142 = vpack.c.b16 %v1034, %v1032
    %v1143 = vpack.c.b16 %v1037, %v1035
    %v1144 = vpack.c.b16 %v1038, %v1036
    %v1145 = vpack.c.b16 %v1041, %v1039
    %v1146 = vpack.c.b16 %v1042, %v1040
    %v1147 = vpack.c.b16 %v1045, %v1043
    %v1148 = vpack.c.b16 %v1046, %v1044
    %v1149 = vpack.c.b16 %v1049, %v1047
    %v1150 = vpack.c.b16 %v1050, %v1048
    %v1151 = vpack.c.b16 %v1053, %v1051
    %v1152 = vpack.c.b16 %v1054, %v1052
    %v1153 = vpack.c.b16 %v1057, %v1055
    %v1154 = vpack.c.b16 %v1058, %v1056
    %v1155 = vpack.c.b16 %v1061, %v1059
    %v1156 = vpack.c.b16 %v1062, %v1060
    %v1157 = vpack.c.b16 %v1065, %v1063
    %v1158 = vpack.c.b16 %v1066, %v1064
    %v1159 = vpack.c.b16 %v1069, %v1067
    %v1160 = vpack.c.b16 %v1070, %v1068
    %v1161 = vpack.c.b16 %v1073, %v1071
    %v1162 = vpack.c.b16 %v1074, %v1072
    %v1163 = vpack.c.b16 %v1077, %v1075
    %v1164 = vpack.c.b16 %v1078, %v1076
    %v1165 = vpack.c.b16 %v1081, %v1079
    %v1166 = vpack.c.b16 %v1082, %v1080
    %v1167 = vpack.c.b16 %v1085, %v1083
    %v1168 = vpack.c.b16 %v1086, %v1084
    %v1169 = vpack.c.b16 %v1089, %v1087
    %v1170 = vpack.c.b16 %v1090, %v1088
    %v1171 = vpack.c.b16 %v1093, %v1091
    %v1172 = vpack.c.b16 %v1094, %v1092
    %v1173 = vpack.c.b16 %v1097, %v1095
    %v1174 = vpack.c.b16 %v1098, %v1096
    %v1175 = vpack.c.b16 %v1101, %v1099
    %v1176 = vpack.c.b16 %v1102, %v1100
    %v1177 = vpack.c.b16 %v1105, %v1103
    %v1178 = vpack.c.b16 %v1106, %v1104
    %v1179 = vpack.c.b16 %v1109, %v1107
    %v1180 = vpack.c.b16 %v1110, %v1108
    %v1181 = vpack.c.b16 %v1113, %v1111
    %v1182 = vpack.c.b16 %v1114, %v1112
    %v1183 = vpack.c.b16 %v1117, %v1115
    %v1184 = vpack.c.b16 %v1118, %v1116
    %v1185 = vpack.c.b16 %v1121, %v1119
    %v1186 = vpack.c.b16 %v1122, %v1120
    %vm1219 = vcmask 277504
    %v1221 = vsel %vm1219, %v1124, 0
    %v1224 = vsel %vm1219, %v1126, 0
    %v1227 = vsel %vm1219, %v1128, 0
    %v1230 = vsel %vm1219, %v1130, 0
    %v1233 = vsel %vm1219, %v1132, 0
    %v1236 = vsel %vm1219, %v1134, 0
    %v1239 = vsel %vm1219, %v1136, 0
    %v1242 = vsel %vm1219, %v1138, 0
    %v1245 = vsel %vm1219, %v1140, 0
    %v1248 = vsel %vm1219, %v1142, 0
    %v1251 = vsel %vm1219, %v1144, 0
    %v1254 = vsel %vm1219, %v1146, 0
    %v1257 = vsel %vm1219, %v1148, 0
    %v1260 = vsel %vm1219, %v1150, 0
    %v1263 = vsel %vm1219, %v1152, 0
    %v1266 = vsel %vm1219, %v1154, 0
    %v1269 = vsel %vm1219, %v1156, 0
    %v1272 = vsel %vm1219, %v1158, 0
    %v1275 = vsel %vm1219, %v1160, 0
    %v1278 = vsel %vm1219, %v1162, 0
    %v1281 = vsel %vm1219, %v1164, 0
    %v1284 = vsel %vm1219, %v1166, 0
    %v1287 = vsel %vm1219, %v1168, 0
    %v1290 = vsel %vm1219, %v1170, 0
    %v1293 = vsel %vm1219, %v1172, 0
    %v1296 = vsel %vm1219, %v1174, 0
    %v1299 = vsel %vm1219, %v1176, 0
    %v1302 = vsel %vm1219, %v1178, 0
    %v1305 = vsel %vm1219, %v1180, 0
    %v1308 = vsel %vm1219, %v1182, 0
    %v1311 = vsel %vm1219, %v1184, 0
    %v1314 = vsel %vm1219, %v1186, 0
    %vm1316 = vcmask 1040384
    %v1318 = vsel %vm1316, %v930, 0
    %1320 = vmatpush.bf16.msra.mxu0 %v927
    %1321 = vmatpush.bf16.msra.mxu0 %v926
    %1322 = vmatpush.bf16.msra.mxu0 %v925
    %1323 = vmatpush.bf16.msra.mxu0 %v924
    %1324 = vmatpush.bf16.msra.mxu0 %v923
    %1325 = vmatpush.bf16.msra.mxu0 %v922
    %1326 = vmatpush.bf16.msra.mxu0 %v921
    %1327 = vmatpush.bf16.msra.mxu0 %v920
    %1328 = vmatmul.bf16.gmra.mxu0 %v1123
    %v1329 = vpop.f32.mrf.mxu0
    %v1330 = vadd.f32 0.0, %v1329
    %v1331 = vpop.f32.mrf.mxu0
    %v1332 = vadd.f32 0.0, %v1331
    %1333 = vmatmul.bf16.gmra.mxu0 %v1125
    %v1334 = vpop.f32.mrf.mxu0
    %v1335 = vadd.f32 0.0, %v1334
    %v1336 = vpop.f32.mrf.mxu0
    %v1337 = vadd.f32 0.0, %v1336
    %1338 = vmatmul.bf16.gmra.mxu0 %v1127
    %v1339 = vpop.f32.mrf.mxu0
    %v1340 = vadd.f32 0.0, %v1339
    %v1341 = vpop.f32.mrf.mxu0
    %v1342 = vadd.f32 0.0, %v1341
    %1343 = vmatmul.bf16.gmra.mxu0 %v1129
    %v1344 = vpop.f32.mrf.mxu0
    %v1345 = vadd.f32 0.0, %v1344
    %v1346 = vpop.f32.mrf.mxu0
    %v1347 = vadd.f32 0.0, %v1346
    %1348 = vmatmul.bf16.gmra.mxu0 %v1131
    %v1349 = vpop.f32.mrf.mxu0
    %v1350 = vadd.f32 0.0, %v1349
    %v1351 = vpop.f32.mrf.mxu0
    %v1352 = vadd.f32 0.0, %v1351
    %1353 = vmatmul.bf16.gmra.mxu0 %v1133
    %v1354 = vpop.f32.mrf.mxu0
    %v1355 = vadd.f32 0.0, %v1354
    %v1356 = vpop.f32.mrf.mxu0
    %v1357 = vadd.f32 0.0, %v1356
    %1358 = vmatmul.bf16.gmra.mxu0 %v1135
    %v1359 = vpop.f32.mrf.mxu0
    %v1360 = vadd.f32 0.0, %v1359
    %v1361 = vpop.f32.mrf.mxu0
    %v1362 = vadd.f32 0.0, %v1361
    %1363 = vmatmul.bf16.gmra.mxu0 %v1137
    %v1364 = vpop.f32.mrf.mxu0
    %v1365 = vadd.f32 0.0, %v1364
    %v1366 = vpop.f32.mrf.mxu0
    %v1367 = vadd.f32 0.0, %v1366
    %1368 = vmatmul.bf16.gmra.mxu0 %v1139
    %v1369 = vpop.f32.mrf.mxu0
    %v1370 = vadd.f32 0.0, %v1369
    %v1371 = vpop.f32.mrf.mxu0
    %v1372 = vadd.f32 0.0, %v1371
    %1373 = vmatmul.bf16.gmra.mxu0 %v1141
    %v1374 = vpop.f32.mrf.mxu0
    %v1375 = vadd.f32 0.0, %v1374
    %v1376 = vpop.f32.mrf.mxu0
    %v1377 = vadd.f32 0.0, %v1376
    %1378 = vmatmul.bf16.gmra.mxu0 %v1143
    %v1379 = vpop.f32.mrf.mxu0
    %v1380 = vadd.f32 0.0, %v1379
    %v1381 = vpop.f32.mrf.mxu0
    %v1382 = vadd.f32 0.0, %v1381
    %1383 = vmatmul.bf16.gmra.mxu0 %v1145
    %v1384 = vpop.f32.mrf.mxu0
    %v1385 = vadd.f32 0.0, %v1384
    %v1386 = vpop.f32.mrf.mxu0
    %v1387 = vadd.f32 0.0, %v1386
    %1388 = vmatmul.bf16.gmra.mxu0 %v1147
    %v1389 = vpop.f32.mrf.mxu0
    %v1390 = vadd.f32 0.0, %v1389
    %v1391 = vpop.f32.mrf.mxu0
    %v1392 = vadd.f32 0.0, %v1391
    %1393 = vmatmul.bf16.gmra.mxu0 %v1149
    %v1394 = vpop.f32.mrf.mxu0
    %v1395 = vadd.f32 0.0, %v1394
    %v1396 = vpop.f32.mrf.mxu0
    %v1397 = vadd.f32 0.0, %v1396
    %1398 = vmatmul.bf16.gmra.mxu0 %v1151
    %v1399 = vpop.f32.mrf.mxu0
    %v1400 = vadd.f32 0.0, %v1399
    %v1401 = vpop.f32.mrf.mxu0
    %v1402 = vadd.f32 0.0, %v1401
    %1403 = vmatmul.bf16.gmra.mxu0 %v1153
    %v1404 = vpop.f32.mrf.mxu0
    %v1405 = vadd.f32 0.0, %v1404
    %v1406 = vpop.f32.mrf.mxu0
    %v1407 = vadd.f32 0.0, %v1406
    %1408 = vmatmul.bf16.gmra.mxu0 %v1155
    %v1409 = vpop.f32.mrf.mxu0
    %v1410 = vadd.f32 0.0, %v1409
    %v1411 = vpop.f32.mrf.mxu0
    %v1412 = vadd.f32 0.0, %v1411
    %1413 = vmatmul.bf16.gmra.mxu0 %v1157
    %v1414 = vpop.f32.mrf.mxu0
    %v1415 = vadd.f32 0.0, %v1414
    %v1416 = vpop.f32.mrf.mxu0
    %v1417 = vadd.f32 0.0, %v1416
    %1418 = vmatmul.bf16.gmra.mxu0 %v1159
    %v1419 = vpop.f32.mrf.mxu0
    %v1420 = vadd.f32 0.0, %v1419
    %v1421 = vpop.f32.mrf.mxu0
    %v1422 = vadd.f32 0.0, %v1421
    %1423 = vmatmul.bf16.gmra.mxu0 %v1161
    %v1424 = vpop.f32.mrf.mxu0
    %v1425 = vadd.f32 0.0, %v1424
    %v1426 = vpop.f32.mrf.mxu0
    %v1427 = vadd.f32 0.0, %v1426
    %1428 = vmatmul.bf16.gmra.mxu0 %v1163
    %v1429 = vpop.f32.mrf.mxu0
    %v1430 = vadd.f32 0.0, %v1429
    %v1431 = vpop.f32.mrf.mxu0
    %v1432 = vadd.f32 0.0, %v1431
    %1433 = vmatmul.bf16.gmra.mxu0 %v1165
    %v1434 = vpop.f32.mrf.mxu0
    %v1435 = vadd.f32 0.0, %v1434
    %v1436 = vpop.f32.mrf.mxu0
    %v1437 = vadd.f32 0.0, %v1436
    %1438 = vmatmul.bf16.gmra.mxu0 %v1167
    %v1439 = vpop.f32.mrf.mxu0
    %v1440 = vadd.f32 0.0, %v1439
    %v1441 = vpop.f32.mrf.mxu0
    %v1442 = vadd.f32 0.0, %v1441
    %1443 = vmatmul.bf16.gmra.mxu0 %v1169
    %v1444 = vpop.f32.mrf.mxu0
    %v1445 = vadd.f32 0.0, %v1444
    %v1446 = vpop.f32.mrf.mxu0
    %v1447 = vadd.f32 0.0, %v1446
    %1448 = vmatmul.bf16.gmra.mxu0 %v1171
    %v1449 = vpop.f32.mrf.mxu0
    %v1450 = vadd.f32 0.0, %v1449
    %v1451 = vpop.f32.mrf.mxu0
    %v1452 = vadd.f32 0.0, %v1451
    %1453 = vmatmul.bf16.gmra.mxu0 %v1173
    %v1454 = vpop.f32.mrf.mxu0
    %v1455 = vadd.f32 0.0, %v1454
    %v1456 = vpop.f32.mrf.mxu0
    %v1457 = vadd.f32 0.0, %v1456
    %1458 = vmatmul.bf16.gmra.mxu0 %v1175
    %v1459 = vpop.f32.mrf.mxu0
    %v1460 = vadd.f32 0.0, %v1459
    %v1461 = vpop.f32.mrf.mxu0
    %v1462 = vadd.f32 0.0, %v1461
    %1463 = vmatmul.bf16.gmra.mxu0 %v1177
    %v1464 = vpop.f32.mrf.mxu0
    %v1465 = vadd.f32 0.0, %v1464
    %v1466 = vpop.f32.mrf.mxu0
    %v1467 = vadd.f32 0.0, %v1466
    %1468 = vmatmul.bf16.gmra.mxu0 %v1179
    %v1469 = vpop.f32.mrf.mxu0
    %v1470 = vadd.f32 0.0, %v1469
    %v1471 = vpop.f32.mrf.mxu0
    %v1472 = vadd.f32 0.0, %v1471
    %1473 = vmatmul.bf16.gmra.mxu0 %v1181
    %v1474 = vpop.f32.mrf.mxu0
    %v1475 = vadd.f32 0.0, %v1474
    %v1476 = vpop.f32.mrf.mxu0
    %v1477 = vadd.f32 0.0, %v1476
    %1478 = vmatmul.bf16.gmra.mxu0 %v1183
    %v1479 = vpop.f32.mrf.mxu0
    %v1480 = vadd.f32 0.0, %v1479
    %v1481 = vpop.f32.mrf.mxu0
    %v1482 = vadd.f32 0.0, %v1481
    %1483 = vmatmul.bf16.gmra.mxu0 %v1185
    %v1484 = vpop.f32.mrf.mxu0
    %v1485 = vadd.f32 0.0, %v1484
    %v1486 = vpop.f32.mrf.mxu0
    %v1487 = vadd.f32 0.0, %v1486
    %1488 = vdwg.mxu0
    %1489 = vmatpush.bf16.msra.mxu0 0
    %1490 = vmatpush.bf16.msra.mxu0 0
    %1491 = vmatpush.bf16.msra.mxu0 0
    %1492 = vmatpush.bf16.msra.mxu0 0
    %1493 = vmatpush.bf16.msra.mxu0 0
    %1494 = vmatpush.bf16.msra.mxu0 %v1318
    %1495 = vmatpush.bf16.msra.mxu0 %v929
    %1496 = vmatpush.bf16.msra.mxu0 %v928
    %1497 = vmatmul.bf16.gmra.mxu0 %v1221
    %v1498 = vpop.f32.mrf.mxu0
    %v1499 = vadd.f32 %v1330, %v1498
    %v1500 = vpop.f32.mrf.mxu0
    %v1501 = vadd.f32 %v1332, %v1500
    %1502 = vmatmul.bf16.gmra.mxu0 %v1224
    %v1503 = vpop.f32.mrf.mxu0
    %v1504 = vadd.f32 %v1335, %v1503
    %v1505 = vpop.f32.mrf.mxu0
    %v1506 = vadd.f32 %v1337, %v1505
    %1507 = vmatmul.bf16.gmra.mxu0 %v1227
    %v1508 = vpop.f32.mrf.mxu0
    %v1509 = vadd.f32 %v1340, %v1508
    %v1510 = vpop.f32.mrf.mxu0
    %v1511 = vadd.f32 %v1342, %v1510
    %1512 = vmatmul.bf16.gmra.mxu0 %v1230
    %v1513 = vpop.f32.mrf.mxu0
    %v1514 = vadd.f32 %v1345, %v1513
    %v1515 = vpop.f32.mrf.mxu0
    %v1516 = vadd.f32 %v1347, %v1515
    %1517 = vmatmul.bf16.gmra.mxu0 %v1233
    %v1518 = vpop.f32.mrf.mxu0
    %v1519 = vadd.f32 %v1350, %v1518
    %v1520 = vpop.f32.mrf.mxu0
    %v1521 = vadd.f32 %v1352, %v1520
    %1522 = vmatmul.bf16.gmra.mxu0 %v1236
    %v1523 = vpop.f32.mrf.mxu0
    %v1524 = vadd.f32 %v1355, %v1523
    %v1525 = vpop.f32.mrf.mxu0
    %v1526 = vadd.f32 %v1357, %v1525
    %1527 = vmatmul.bf16.gmra.mxu0 %v1239
    %v1528 = vpop.f32.mrf.mxu0
    %v1529 = vadd.f32 %v1360, %v1528
    %v1530 = vpop.f32.mrf.mxu0
    %v1531 = vadd.f32 %v1362, %v1530
    %1532 = vmatmul.bf16.gmra.mxu0 %v1242
    %v1533 = vpop.f32.mrf.mxu0
    %v1534 = vadd.f32 %v1365, %v1533
    %v1535 = vpop.f32.mrf.mxu0
    %v1536 = vadd.f32 %v1367, %v1535
    %1537 = vmatmul.bf16.gmra.mxu0 %v1245
    %v1538 = vpop.f32.mrf.mxu0
    %v1539 = vadd.f32 %v1370, %v1538
    %v1540 = vpop.f32.mrf.mxu0
    %v1541 = vadd.f32 %v1372, %v1540
    %1542 = vmatmul.bf16.gmra.mxu0 %v1248
    %v1543 = vpop.f32.mrf.mxu0
    %v1544 = vadd.f32 %v1375, %v1543
    %v1545 = vpop.f32.mrf.mxu0
    %v1546 = vadd.f32 %v1377, %v1545
    %1547 = vmatmul.bf16.gmra.mxu0 %v1251
    %v1548 = vpop.f32.mrf.mxu0
    %v1549 = vadd.f32 %v1380, %v1548
    %v1550 = vpop.f32.mrf.mxu0
    %v1551 = vadd.f32 %v1382, %v1550
    %1552 = vmatmul.bf16.gmra.mxu0 %v1254
    %v1553 = vpop.f32.mrf.mxu0
    %v1554 = vadd.f32 %v1385, %v1553
    %v1555 = vpop.f32.mrf.mxu0
    %v1556 = vadd.f32 %v1387, %v1555
    %1557 = vmatmul.bf16.gmra.mxu0 %v1257
    %v1558 = vpop.f32.mrf.mxu0
    %v1559 = vadd.f32 %v1390, %v1558
    %v1560 = vpop.f32.mrf.mxu0
    %v1561 = vadd.f32 %v1392, %v1560
    %1562 = vmatmul.bf16.gmra.mxu0 %v1260
    %v1563 = vpop.f32.mrf.mxu0
    %v1564 = vadd.f32 %v1395, %v1563
    %v1565 = vpop.f32.mrf.mxu0
    %v1566 = vadd.f32 %v1397, %v1565
    %1567 = vmatmul.bf16.gmra.mxu0 %v1263
    %v1568 = vpop.f32.mrf.mxu0
    %v1569 = vadd.f32 %v1400, %v1568
    %v1570 = vpop.f32.mrf.mxu0
    %v1571 = vadd.f32 %v1402, %v1570
    %1572 = vmatmul.bf16.gmra.mxu0 %v1266
    %v1573 = vpop.f32.mrf.mxu0
    %v1574 = vadd.f32 %v1405, %v1573
    %v1575 = vpop.f32.mrf.mxu0
    %v1576 = vadd.f32 %v1407, %v1575
    %1577 = vmatmul.bf16.gmra.mxu0 %v1269
    %v1578 = vpop.f32.mrf.mxu0
    %v1579 = vadd.f32 %v1410, %v1578
    %v1580 = vpop.f32.mrf.mxu0
    %v1581 = vadd.f32 %v1412, %v1580
    %1582 = vmatmul.bf16.gmra.mxu0 %v1272
    %v1583 = vpop.f32.mrf.mxu0
    %v1584 = vadd.f32 %v1415, %v1583
    %v1585 = vpop.f32.mrf.mxu0
    %v1586 = vadd.f32 %v1417, %v1585
    %1587 = vmatmul.bf16.gmra.mxu0 %v1275
    %v1588 = vpop.f32.mrf.mxu0
    %v1589 = vadd.f32 %v1420, %v1588
    %v1590 = vpop.f32.mrf.mxu0
    %v1591 = vadd.f32 %v1422, %v1590
    %1592 = vmatmul.bf16.gmra.mxu0 %v1278
    %v1593 = vpop.f32.mrf.mxu0
    %v1594 = vadd.f32 %v1425, %v1593
    %v1595 = vpop.f32.mrf.mxu0
    %v1596 = vadd.f32 %v1427, %v1595
    %1597 = vmatmul.bf16.gmra.mxu0 %v1281
    %v1598 = vpop.f32.mrf.mxu0
    %v1599 = vadd.f32 %v1430, %v1598
    %v1600 = vpop.f32.mrf.mxu0
    %v1601 = vadd.f32 %v1432, %v1600
    %1602 = vmatmul.bf16.gmra.mxu0 %v1284
    %v1603 = vpop.f32.mrf.mxu0
    %v1604 = vadd.f32 %v1435, %v1603
    %v1605 = vpop.f32.mrf.mxu0
    %v1606 = vadd.f32 %v1437, %v1605
    %1607 = vmatmul.bf16.gmra.mxu0 %v1287
    %v1608 = vpop.f32.mrf.mxu0
    %v1609 = vadd.f32 %v1440, %v1608
    %v1610 = vpop.f32.mrf.mxu0
    %v1611 = vadd.f32 %v1442, %v1610
    %1612 = vmatmul.bf16.gmra.mxu0 %v1290
    %v1613 = vpop.f32.mrf.mxu0
    %v1614 = vadd.f32 %v1445, %v1613
    %v1615 = vpop.f32.mrf.mxu0
    %v1616 = vadd.f32 %v1447, %v1615
    %1617 = vmatmul.bf16.gmra.mxu0 %v1293
    %v1618 = vpop.f32.mrf.mxu0
    %v1619 = vadd.f32 %v1450, %v1618
    %v1620 = vpop.f32.mrf.mxu0
    %v1621 = vadd.f32 %v1452, %v1620
    %1622 = vmatmul.bf16.gmra.mxu0 %v1296
    %v1623 = vpop.f32.mrf.mxu0
    %v1624 = vadd.f32 %v1455, %v1623
    %v1625 = vpop.f32.mrf.mxu0
    %v1626 = vadd.f32 %v1457, %v1625
    %1627 = vmatmul.bf16.gmra.mxu0 %v1299
    %v1628 = vpop.f32.mrf.mxu0
    %v1629 = vadd.f32 %v1460, %v1628
    %v1630 = vpop.f32.mrf.mxu0
    %v1631 = vadd.f32 %v1462, %v1630
    %1632 = vmatmul.bf16.gmra.mxu0 %v1302
    %v1633 = vpop.f32.mrf.mxu0
    %v1634 = vadd.f32 %v1465, %v1633
    %v1635 = vpop.f32.mrf.mxu0
    %v1636 = vadd.f32 %v1467, %v1635
    %1637 = vmatmul.bf16.gmra.mxu0 %v1305
    %v1638 = vpop.f32.mrf.mxu0
    %v1639 = vadd.f32 %v1470, %v1638
    %v1640 = vpop.f32.mrf.mxu0
    %v1641 = vadd.f32 %v1472, %v1640
    %1642 = vmatmul.bf16.gmra.mxu0 %v1308
    %v1643 = vpop.f32.mrf.mxu0
    %v1644 = vadd.f32 %v1475, %v1643
    %v1645 = vpop.f32.mrf.mxu0
    %v1646 = vadd.f32 %v1477, %v1645
    %1647 = vmatmul.bf16.gmra.mxu0 %v1311
    %v1648 = vpop.f32.mrf.mxu0
    %v1649 = vadd.f32 %v1480, %v1648
    %v1650 = vpop.f32.mrf.mxu0
    %v1651 = vadd.f32 %v1482, %v1650
    %1652 = vmatmul.bf16.gmra.mxu0 %v1314
    %v1653 = vpop.f32.mrf.mxu0
    %v1654 = vadd.f32 %v1485, %v1653
    %v1655 = vpop.f32.mrf.mxu0
    %v1656 = vadd.f32 %v1487, %v1655
    %1657 = vdwg.mxu0
    %v1658 = vld [vmem:[%s4] sm:$0xf]
    %v1659 = vld [vmem:[%s4 + $0x4] sm:$0x3]
    %v1660 = vpack.c.bf16 %v1501, %v1499
    %v1661 = vpack.c.bf16 %v1506, %v1504
    %v1662 = vpack.c.bf16 %v1511, %v1509
    %v1663 = vpack.c.bf16 %v1516, %v1514
    %v1664 = vpack.c.bf16 %v1521, %v1519
    %v1665 = vpack.c.bf16 %v1526, %v1524
    %v1666 = vpack.c.bf16 %v1531, %v1529
    %v1667 = vpack.c.bf16 %v1536, %v1534
    %s1668 = scalar_lea.vmem %s4, 8
    %v1669 = vld [vmem:[%s1668] sm:$0xf]
    %v1670 = vld [vmem:[%s1668 + $0x4] sm:$0x3]
    %v1671 = vpack.c.bf16 %v1541, %v1539
    %v1672 = vpack.c.bf16 %v1546, %v1544
    %v1673 = vpack.c.bf16 %v1551, %v1549
    %v1674 = vpack.c.bf16 %v1556, %v1554
    %v1675 = vpack.c.bf16 %v1561, %v1559
    %v1676 = vpack.c.bf16 %v1566, %v1564
    %v1677 = vpack.c.bf16 %v1571, %v1569
    %v1678 = vpack.c.bf16 %v1576, %v1574
    %v1681 = vunpack.c.l.b16 %v1669
    %v1682 = vunpack.c.l.b16 %v1670
    %v1683 = vpack.c.b16 %v1682, %v1681
    %v1685 = vsel %vm133, %v1671, 0
    %v1688 = vsel %vm133, %v1672, 0
    %v1691 = vsel %vm133, %v1673, 0
    %v1694 = vsel %vm133, %v1674, 0
    %v1697 = vsel %vm133, %v1675, 0
    %v1700 = vsel %vm133, %v1676, 0
    %v1703 = vsel %vm133, %v1677, 0
    %v1706 = vsel %vm133, %v1678, 0
    %v1709 = vsel %vm167, %v1683, 0
    %1711 = vmatpush.bf16.msra.mxu0 0
    %1712 = vmatpush.bf16.msra.mxu0 0
    %1713 = vmatpush.bf16.msra.mxu0 0
    %1714 = vmatpush.bf16.msra.mxu0 0
    %1715 = vmatpush.bf16.msra.mxu0 0
    %1716 = vmatpush.bf16.msra.mxu0 0
    %1717 = vmatpush.bf16.msra.mxu0 0
    %1718 = vmatpush.bf16.msra.mxu0 %v1709
    %1719 = vmatmul.bf16.gmra.mxu0 %v1685
    %v1720 = vpop.f32.mrf.mxu0
    %v1721 = vadd.f32 0.0, %v1720
    %v1722 = vpop.f32.mrf.mxu0
    %v1723 = vadd.f32 0.0, %v1722
    %1724 = vmatmul.bf16.gmra.mxu0 %v1688
    %v1725 = vpop.f32.mrf.mxu0
    %v1726 = vadd.f32 0.0, %v1725
    %v1727 = vpop.f32.mrf.mxu0
    %v1728 = vadd.f32 0.0, %v1727
    %1729 = vmatmul.bf16.gmra.mxu0 %v1691
    %v1730 = vpop.f32.mrf.mxu0
    %v1731 = vadd.f32 0.0, %v1730
    %v1732 = vpop.f32.mrf.mxu0
    %v1733 = vadd.f32 0.0, %v1732
    %1734 = vmatmul.bf16.gmra.mxu0 %v1694
    %v1735 = vpop.f32.mrf.mxu0
    %v1736 = vadd.f32 0.0, %v1735
    %v1737 = vpop.f32.mrf.mxu0
    %v1738 = vadd.f32 0.0, %v1737
    %1739 = vmatmul.bf16.gmra.mxu0 %v1697
    %v1740 = vpop.f32.mrf.mxu0
    %v1741 = vadd.f32 0.0, %v1740
    %v1742 = vpop.f32.mrf.mxu0
    %v1743 = vadd.f32 0.0, %v1742
    %1744 = vmatmul.bf16.gmra.mxu0 %v1700
    %v1745 = vpop.f32.mrf.mxu0
    %v1746 = vadd.f32 0.0, %v1745
    %v1747 = vpop.f32.mrf.mxu0
    %v1748 = vadd.f32 0.0, %v1747
    %1749 = vmatmul.bf16.gmra.mxu0 %v1703
    %v1750 = vpop.f32.mrf.mxu0
    %v1751 = vadd.f32 0.0, %v1750
    %v1752 = vpop.f32.mrf.mxu0
    %v1753 = vadd.f32 0.0, %v1752
    %1754 = vmatmul.bf16.gmra.mxu0 %v1706
    %v1755 = vpop.f32.mrf.mxu0
    %v1756 = vadd.f32 0.0, %v1755
    %v1757 = vpop.f32.mrf.mxu0
    %v1758 = vadd.f32 0.0, %v1757
    %1759 = vdwg.mxu0
    %v1762 = vunpack.c.l.b16 %v1658
    %v1763 = vunpack.c.l.b16 %v1659
    %v1764 = vpack.c.b16 %v1763, %v1762
    %v1766 = vsel %vm133, %v1660, 0
    %v1769 = vsel %vm133, %v1661, 0
    %v1772 = vsel %vm133, %v1662, 0
    %v1775 = vsel %vm133, %v1663, 0
    %v1778 = vsel %vm133, %v1664, 0
    %v1781 = vsel %vm133, %v1665, 0
    %v1784 = vsel %vm133, %v1666, 0
    %v1787 = vsel %vm133, %v1667, 0
    %v1790 = vsel %vm167, %v1764, 0
    %1792 = vmatpush.bf16.msra.mxu0 0
    %1793 = vmatpush.bf16.msra.mxu0 0
    %1794 = vmatpush.bf16.msra.mxu0 0
    %1795 = vmatpush.bf16.msra.mxu0 0
    %1796 = vmatpush.bf16.msra.mxu0 0
    %1797 = vmatpush.bf16.msra.mxu0 0
    %1798 = vmatpush.bf16.msra.mxu0 0
    %1799 = vmatpush.bf16.msra.mxu0 %v1790
    %1800 = vmatmul.bf16.gmra.mxu0 %v1766
    %v1801 = vpop.f32.mrf.mxu0
    %v1802 = vadd.f32 %v1721, %v1801
    %v1803 = vpop.f32.mrf.mxu0
    %v1804 = vadd.f32 %v1723, %v1803
    %1805 = vmatmul.bf16.gmra.mxu0 %v1769
    %v1806 = vpop.f32.mrf.mxu0
    %v1807 = vadd.f32 %v1726, %v1806
    %v1808 = vpop.f32.mrf.mxu0
    %v1809 = vadd.f32 %v1728, %v1808
    %1810 = vmatmul.bf16.gmra.mxu0 %v1772
    %v1811 = vpop.f32.mrf.mxu0
    %v1812 = vadd.f32 %v1731, %v1811
    %v1813 = vpop.f32.mrf.mxu0
    %v1814 = vadd.f32 %v1733, %v1813
    %1815 = vmatmul.bf16.gmra.mxu0 %v1775
    %v1816 = vpop.f32.mrf.mxu0
    %v1817 = vadd.f32 %v1736, %v1816
    %v1818 = vpop.f32.mrf.mxu0
    %v1819 = vadd.f32 %v1738, %v1818
    %1820 = vmatmul.bf16.gmra.mxu0 %v1778
    %v1821 = vpop.f32.mrf.mxu0
    %v1822 = vadd.f32 %v1741, %v1821
    %v1823 = vpop.f32.mrf.mxu0
    %v1824 = vadd.f32 %v1743, %v1823
    %1825 = vmatmul.bf16.gmra.mxu0 %v1781
    %v1826 = vpop.f32.mrf.mxu0
    %v1827 = vadd.f32 %v1746, %v1826
    %v1828 = vpop.f32.mrf.mxu0
    %v1829 = vadd.f32 %v1748, %v1828
    %1830 = vmatmul.bf16.gmra.mxu0 %v1784
    %v1831 = vpop.f32.mrf.mxu0
    %v1832 = vadd.f32 %v1751, %v1831
    %v1833 = vpop.f32.mrf.mxu0
    %v1834 = vadd.f32 %v1753, %v1833
    %1835 = vmatmul.bf16.gmra.mxu0 %v1787
    %v1836 = vpop.f32.mrf.mxu0
    %v1837 = vadd.f32 %v1756, %v1836
    %v1838 = vpop.f32.mrf.mxu0
    %v1839 = vadd.f32 %v1758, %v1838
    %1840 = vdwg.mxu0
    %s1841 = scalar_lea.vmem %s4, 16
    %v1842 = vld [vmem:[%s1841] sm:$0xf]
    %v1843 = vld [vmem:[%s1841 + $0x4] sm:$0x3]
    %v1844 = vpack.c.bf16 %v1581, %v1579
    %v1845 = vpack.c.bf16 %v1586, %v1584
    %v1846 = vpack.c.bf16 %v1591, %v1589
    %v1847 = vpack.c.bf16 %v1596, %v1594
    %v1848 = vpack.c.bf16 %v1601, %v1599
    %v1849 = vpack.c.bf16 %v1606, %v1604
    %v1850 = vpack.c.bf16 %v1611, %v1609
    %v1851 = vpack.c.bf16 %v1616, %v1614
    %v1854 = vunpack.c.l.b16 %v1842
    %v1855 = vunpack.c.l.b16 %v1843
    %v1856 = vpack.c.b16 %v1855, %v1854
    %v1858 = vsel %vm133, %v1844, 0
    %v1861 = vsel %vm133, %v1845, 0
    %v1864 = vsel %vm133, %v1846, 0
    %v1867 = vsel %vm133, %v1847, 0
    %v1870 = vsel %vm133, %v1848, 0
    %v1873 = vsel %vm133, %v1849, 0
    %v1876 = vsel %vm133, %v1850, 0
    %v1879 = vsel %vm133, %v1851, 0
    %v1882 = vsel %vm167, %v1856, 0
    %1884 = vmatpush.bf16.msra.mxu0 0
    %1885 = vmatpush.bf16.msra.mxu0 0
    %1886 = vmatpush.bf16.msra.mxu0 0
    %1887 = vmatpush.bf16.msra.mxu0 0
    %1888 = vmatpush.bf16.msra.mxu0 0
    %1889 = vmatpush.bf16.msra.mxu0 0
    %1890 = vmatpush.bf16.msra.mxu0 0
    %1891 = vmatpush.bf16.msra.mxu0 %v1882
    %1892 = vmatmul.bf16.gmra.mxu0 %v1858
    %v1893 = vpop.f32.mrf.mxu0
    %v1894 = vadd.f32 0.0, %v1893
    %v1895 = vpop.f32.mrf.mxu0
    %v1896 = vadd.f32 0.0, %v1895
    %1897 = vmatmul.bf16.gmra.mxu0 %v1861
    %v1898 = vpop.f32.mrf.mxu0
    %v1899 = vadd.f32 0.0, %v1898
    %v1900 = vpop.f32.mrf.mxu0
    %v1901 = vadd.f32 0.0, %v1900
    %1902 = vmatmul.bf16.gmra.mxu0 %v1864
    %v1903 = vpop.f32.mrf.mxu0
    %v1904 = vadd.f32 0.0, %v1903
    %v1905 = vpop.f32.mrf.mxu0
    %v1906 = vadd.f32 0.0, %v1905
    %1907 = vmatmul.bf16.gmra.mxu0 %v1867
    %v1908 = vpop.f32.mrf.mxu0
    %v1909 = vadd.f32 0.0, %v1908
    %v1910 = vpop.f32.mrf.mxu0
    %v1911 = vadd.f32 0.0, %v1910
    %1912 = vmatmul.bf16.gmra.mxu0 %v1870
    %v1913 = vpop.f32.mrf.mxu0
    %v1914 = vadd.f32 0.0, %v1913
    %v1915 = vpop.f32.mrf.mxu0
    %v1916 = vadd.f32 0.0, %v1915
    %1917 = vmatmul.bf16.gmra.mxu0 %v1873
    %v1918 = vpop.f32.mrf.mxu0
    %v1919 = vadd.f32 0.0, %v1918
    %v1920 = vpop.f32.mrf.mxu0
    %v1921 = vadd.f32 0.0, %v1920
    %1922 = vmatmul.bf16.gmra.mxu0 %v1876
    %v1923 = vpop.f32.mrf.mxu0
    %v1924 = vadd.f32 0.0, %v1923
    %v1925 = vpop.f32.mrf.mxu0
    %v1926 = vadd.f32 0.0, %v1925
    %1927 = vmatmul.bf16.gmra.mxu0 %v1879
    %v1928 = vpop.f32.mrf.mxu0
    %v1929 = vadd.f32 0.0, %v1928
    %v1930 = vpop.f32.mrf.mxu0
    %v1931 = vadd.f32 0.0, %v1930
    %1932 = vdwg.mxu0
    %v1933 = vadd.f32 %v1802, %v1894
    %v1934 = vadd.f32 %v1804, %v1896
    %v1935 = vadd.f32 %v1807, %v1899
    %v1936 = vadd.f32 %v1809, %v1901
    %v1937 = vadd.f32 %v1812, %v1904
    %v1938 = vadd.f32 %v1814, %v1906
    %v1939 = vadd.f32 %v1817, %v1909
    %v1940 = vadd.f32 %v1819, %v1911
    %v1941 = vadd.f32 %v1822, %v1914
    %v1942 = vadd.f32 %v1824, %v1916
    %v1943 = vadd.f32 %v1827, %v1919
    %v1944 = vadd.f32 %v1829, %v1921
    %v1945 = vadd.f32 %v1832, %v1924
    %v1946 = vadd.f32 %v1834, %v1926
    %v1947 = vadd.f32 %v1837, %v1929
    %v1948 = vadd.f32 %v1839, %v1931
    %s1949 = scalar_lea.vmem %s4, 24
    %v1950 = vld [vmem:[%s1949] sm:$0xf]
    %v1951 = vld [vmem:[%s1949 + $0x4] sm:$0x3]
    %v1952 = vpack.c.bf16 %v1621, %v1619
    %v1953 = vpack.c.bf16 %v1626, %v1624
    %v1954 = vpack.c.bf16 %v1631, %v1629
    %v1955 = vpack.c.bf16 %v1636, %v1634
    %v1956 = vpack.c.bf16 %v1641, %v1639
    %v1957 = vpack.c.bf16 %v1646, %v1644
    %v1958 = vpack.c.bf16 %v1651, %v1649
    %v1959 = vpack.c.bf16 %v1656, %v1654
    %v1962 = vunpack.c.l.b16 %v1950
    %v1963 = vunpack.c.l.b16 %v1951
    %v1964 = vpack.c.b16 %v1963, %v1962
    %v1966 = vsel %vm133, %v1952, 0
    %v1969 = vsel %vm133, %v1953, 0
    %v1972 = vsel %vm133, %v1954, 0
    %v1975 = vsel %vm133, %v1955, 0
    %v1978 = vsel %vm133, %v1956, 0
    %v1981 = vsel %vm133, %v1957, 0
    %v1984 = vsel %vm133, %v1958, 0
    %v1987 = vsel %vm133, %v1959, 0
    %v1990 = vsel %vm167, %v1964, 0
    %1992 = vmatpush.bf16.msra.mxu0 0
    %1993 = vmatpush.bf16.msra.mxu0 0
    %1994 = vmatpush.bf16.msra.mxu0 0
    %1995 = vmatpush.bf16.msra.mxu0 0
    %1996 = vmatpush.bf16.msra.mxu0 0
    %1997 = vmatpush.bf16.msra.mxu0 0
    %1998 = vmatpush.bf16.msra.mxu0 0
    %1999 = vmatpush.bf16.msra.mxu0 %v1990
    %2000 = vmatmul.bf16.gmra.mxu0 %v1966
    %v2001 = vpop.f32.mrf.mxu0
    %v2002 = vadd.f32 0.0, %v2001
    %v2003 = vpop.f32.mrf.mxu0
    %v2004 = vadd.f32 0.0, %v2003
    %2005 = vmatmul.bf16.gmra.mxu0 %v1969
    %v2006 = vpop.f32.mrf.mxu0
    %v2007 = vadd.f32 0.0, %v2006
    %v2008 = vpop.f32.mrf.mxu0
    %v2009 = vadd.f32 0.0, %v2008
    %2010 = vmatmul.bf16.gmra.mxu0 %v1972
    %v2011 = vpop.f32.mrf.mxu0
    %v2012 = vadd.f32 0.0, %v2011
    %v2013 = vpop.f32.mrf.mxu0
    %v2014 = vadd.f32 0.0, %v2013
    %2015 = vmatmul.bf16.gmra.mxu0 %v1975
    %v2016 = vpop.f32.mrf.mxu0
    %v2017 = vadd.f32 0.0, %v2016
    %v2018 = vpop.f32.mrf.mxu0
    %v2019 = vadd.f32 0.0, %v2018
    %2020 = vmatmul.bf16.gmra.mxu0 %v1978
    %v2021 = vpop.f32.mrf.mxu0
    %v2022 = vadd.f32 0.0, %v2021
    %v2023 = vpop.f32.mrf.mxu0
    %v2024 = vadd.f32 0.0, %v2023
    %2025 = vmatmul.bf16.gmra.mxu0 %v1981
    %v2026 = vpop.f32.mrf.mxu0
    %v2027 = vadd.f32 0.0, %v2026
    %v2028 = vpop.f32.mrf.mxu0
    %v2029 = vadd.f32 0.0, %v2028
    %2030 = vmatmul.bf16.gmra.mxu0 %v1984
    %v2031 = vpop.f32.mrf.mxu0
    %v2032 = vadd.f32 0.0, %v2031
    %v2033 = vpop.f32.mrf.mxu0
    %v2034 = vadd.f32 0.0, %v2033
    %2035 = vmatmul.bf16.gmra.mxu0 %v1987
    %v2036 = vpop.f32.mrf.mxu0
    %v2037 = vadd.f32 0.0, %v2036
    %v2038 = vpop.f32.mrf.mxu0
    %v2039 = vadd.f32 0.0, %v2038
    %2040 = vdwg.mxu0
    %v2041 = vadd.f32 %v1933, %v2002
    %v2042 = vadd.f32 %v1934, %v2004
    %v2043 = vadd.f32 %v1935, %v2007
    %v2044 = vadd.f32 %v1936, %v2009
    %v2045 = vadd.f32 %v1937, %v2012
    %v2046 = vadd.f32 %v1938, %v2014
    %v2047 = vadd.f32 %v1939, %v2017
    %v2048 = vadd.f32 %v1940, %v2019
    %v2049 = vadd.f32 %v1941, %v2022
    %v2050 = vadd.f32 %v1942, %v2024
    %v2051 = vadd.f32 %v1943, %v2027
    %v2052 = vadd.f32 %v1944, %v2029
    %v2053 = vadd.f32 %v1945, %v2032
    %v2054 = vadd.f32 %v1946, %v2034
    %v2055 = vadd.f32 %v1947, %v2037
    %v2056 = vadd.f32 %v1948, %v2039
    %v2057 = vmax.f32 %v2041, %v2045
    %v2058 = vmax.f32 %v2042, %v2046
    %v2059 = vmax.f32 %v2043, %v2047
    %v2060 = vmax.f32 %v2044, %v2048
    %v2061 = vmax.f32 %v2049, %v2053
    %v2062 = vmax.f32 %v2050, %v2054
    %v2063 = vmax.f32 %v2051, %v2055
    %v2064 = vmax.f32 %v2052, %v2056
    %v2065 = vmax.f32 %v2057, %v2061
    %v2066 = vmax.f32 %v2058, %v2062
    %v2067 = vmax.f32 %v2059, %v2063
    %v2068 = vmax.f32 %v2060, %v2064
    %v2069 = vld [vmem:[%s5] sm:$0x1]
    %v2071 = vperm.slane %v2069, 0
    %v2073 = vadd.f32 %v2065, %v2071
    %v2074 = vadd.f32 %v2066, %v2071
    %v2075 = vadd.f32 %v2067, %v2071
    %v2076 = vadd.f32 %v2068, %v2071
    %v2077 = vmax.f32 %v2073, 0.0
    %v2078 = vmax.f32 %v2074, 0.0
    %v2079 = vmax.f32 %v2075, 0.0
    %v2080 = vmax.f32 %v2076, 0.0
    %v2081 = vld [vmem:[%s6] sm:$0xff]
    %v2082 = vld [vmem:[%s6 + $0x8] sm:$0xf]
    %v2083 = vld [vmem:[%s6 + $0xc] sm:$0xff]
    %v2084 = vld [vmem:[%s6 + $0x14] sm:$0xf]
    %v2085 = vld [vmem:[%s6 + $0x18] sm:$0xff]
    %v2086 = vld [vmem:[%s6 + $0x20] sm:$0xf]
    %v2087 = vpack.c.bf16 %v2078, %v2077
    %v2088 = vpack.c.bf16 %v2080, %v2079
    %v2095 = vunpack.c.l.b16 %v2081
    %v2096 = vunpack.c.h.b16 %v2081
    %v2097 = vunpack.c.l.b16 %v2082
    %v2098 = vunpack.c.l.b16 %v2083
    %v2099 = vunpack.c.h.b16 %v2083
    %v2100 = vunpack.c.l.b16 %v2084
    %v2101 = vunpack.c.l.b16 %v2085
    %v2102 = vunpack.c.h.b16 %v2085
    %v2103 = vunpack.c.l.b16 %v2086
    %v2104 = vpack.c.b16 %v2098, %v2095
    %v2105 = vpack.c.b16 %v2099, %v2096
    %v2106 = vpack.c.b16 %v2100, %v2097
    %v2107 = vpack.c.b16 %v2101, %v2101
    %v2108 = vpack.c.b16 %v2102, %v2102
    %v2109 = vpack.c.b16 %v2103, %v2103
    %vm2113 = vcmask 195584
    %v2115 = vsel %vm2113, %v2087, 0
    %v2118 = vsel %vm2113, %v2088, 0
    %vm2120 = vcmask 1043456
    %v2122 = vsel %vm2120, %v2107, 0
    %v2125 = vsel %vm2120, %v2108, 0
    %v2128 = vsel %vm2120, %v2109, 0
    %2130 = vmatpush.bf16.msra.mxu0 0
    %2131 = vmatpush.bf16.msra.mxu0 0
    %2132 = vmatpush.bf16.msra.mxu0 0
    %2133 = vmatpush.bf16.msra.mxu0 0
    %2134 = vmatpush.bf16.msra.mxu0 0
    %2135 = vmatpush.bf16.msra.mxu0 0
    %2136 = vmatpush.bf16.msra.mxu0 %v2122
    %2137 = vmatpush.bf16.msra.mxu0 %v2104
    %2138 = vmatmul.bf16.gmra.mxu0 %v2115
    %v2139 = vpop.f32.mrf.mxu0
    %v2140 = vadd.f32 0.0, %v2139
    %v2141 = vpop.f32.mrf.mxu0
    %v2142 = vadd.f32 0.0, %v2141
    %2143 = vmatmul.bf16.gmra.mxu0 %v2118
    %v2144 = vpop.f32.mrf.mxu0
    %v2145 = vadd.f32 0.0, %v2144
    %v2146 = vpop.f32.mrf.mxu0
    %v2147 = vadd.f32 0.0, %v2146
    %2148 = vdwg.mxu0
    %2149 = vmatpush.bf16.msra.mxu0 0
    %2150 = vmatpush.bf16.msra.mxu0 0
    %2151 = vmatpush.bf16.msra.mxu0 0
    %2152 = vmatpush.bf16.msra.mxu0 0
    %2153 = vmatpush.bf16.msra.mxu0 0
    %2154 = vmatpush.bf16.msra.mxu0 0
    %2155 = vmatpush.bf16.msra.mxu0 %v2125
    %2156 = vmatpush.bf16.msra.mxu0 %v2105
    %2157 = vmatmul.bf16.gmra.mxu0 %v2115
    %v2158 = vpop.f32.mrf.mxu0
    %v2159 = vadd.f32 0.0, %v2158
    %v2160 = vpop.f32.mrf.mxu0
    %v2161 = vadd.f32 0.0, %v2160
    %2162 = vmatmul.bf16.gmra.mxu0 %v2118
    %v2163 = vpop.f32.mrf.mxu0
    %v2164 = vadd.f32 0.0, %v2163
    %v2165 = vpop.f32.mrf.mxu0
    %v2166 = vadd.f32 0.0, %v2165
    %2167 = vdwg.mxu0
    %2168 = vmatpush.bf16.msra.mxu0 0
    %2169 = vmatpush.bf16.msra.mxu0 0
    %2170 = vmatpush.bf16.msra.mxu0 0
    %2171 = vmatpush.bf16.msra.mxu0 0
    %2172 = vmatpush.bf16.msra.mxu0 0
    %2173 = vmatpush.bf16.msra.mxu0 0
    %2174 = vmatpush.bf16.msra.mxu0 %v2128
    %2175 = vmatpush.bf16.msra.mxu0 %v2106
    %2176 = vmatmul.bf16.gmra.mxu0 %v2115
    %v2177 = vpop.f32.mrf.mxu0
    %v2178 = vadd.f32 0.0, %v2177
    %v2179 = vpop.f32.mrf.mxu0
    %v2180 = vadd.f32 0.0, %v2179
    %2181 = vmatmul.bf16.gmra.mxu0 %v2118
    %v2182 = vpop.f32.mrf.mxu0
    %v2183 = vadd.f32 0.0, %v2182
    %v2184 = vpop.f32.mrf.mxu0
    %v2185 = vadd.f32 0.0, %v2184
    %2186 = vdwg.mxu0
    %v2187 = vld [vmem:[%s7] sm:$0xff]
    %v2188 = vld [vmem:[%s7 + $0x8] sm:$0xff]
    %v2189 = vld [vmem:[%s7 + $0x10] sm:$0xff]
    %v2190 = vld [vmem:[%s7 + $0x18] sm:$0xff]
    %v2191 = vld [vmem:[%s7 + $0x20] sm:$0xff]
    %v2192 = vld [vmem:[%s7 + $0x28] sm:$0xff]
    %v2193 = vld [vmem:[%s7 + $0x30] sm:$0xff]
    %v2194 = vld [vmem:[%s7 + $0x38] sm:$0xff]
    %v2195 = vld [vmem:[%s7 + $0x40] sm:$0xff]
    %v2196 = vld [vmem:[%s7 + $0x48] sm:$0xff]
    %v2197 = vld [vmem:[%s7 + $0x50] sm:$0xff]
    %v2198 = vld [vmem:[%s7 + $0x58] sm:$0xff]
    %v2199 = vmul.f32 %v2140, %v2187
    %v2200 = vmul.f32 %v2159, %v2188
    %v2201 = vmul.f32 %v2178, %v2189
    %v2202 = vmul.f32 %v2142, %v2190
    %v2203 = vmul.f32 %v2161, %v2191
    %v2204 = vmul.f32 %v2180, %v2192
    %v2205 = vmul.f32 %v2145, %v2193
    %v2206 = vmul.f32 %v2164, %v2194
    %v2207 = vmul.f32 %v2183, %v2195
    %v2208 = vmul.f32 %v2147, %v2196
    %v2209 = vmul.f32 %v2166, %v2197
    %v2210 = vmul.f32 %v2185, %v2198
    %v2211 = vld [vmem:[%s8] sm:$0x1]
    %v2212 = vpack.c.bf16 %v2202, %v2199
    %v2213 = vpack.c.bf16 %v2203, %v2200
    %v2214 = vpack.c.bf16 %v2204, %v2201
    %v2215 = vpack.c.bf16 %v2208, %v2205
    %v2216 = vpack.c.bf16 %v2209, %v2206
    %v2217 = vpack.c.bf16 %v2210, %v2207
    %vm2218 = vcmask 261120
    %v2220 = vsel %vm2218, %v2211, 0
    %2222 = vmatpush.bf16.msra.mxu0 0
    %2223 = vmatpush.bf16.msra.mxu0 0
    %2224 = vmatpush.bf16.msra.mxu0 0
    %2225 = vmatpush.bf16.msra.mxu0 0
    %2226 = vmatpush.bf16.msra.mxu0 0
    %2227 = vmatpush.bf16.msra.mxu0 0
    %2228 = vmatpush.bf16.msra.mxu0 %v2215
    %2229 = vmatpush.bf16.msra.mxu0 %v2212
    %2230 = vmatmul.bf16.gmra.mxu0 %v2220
    %v2231 = vpop.f32.mrf.mxu0
    %v2232 = vadd.f32 0.0, %v2231
    %v2233 = vpop.f32.mrf.mxu0
    %2234 = vdwg.mxu0
    %2235 = vmatpush.bf16.msra.mxu0 0
    %2236 = vmatpush.bf16.msra.mxu0 0
    %2237 = vmatpush.bf16.msra.mxu0 0
    %2238 = vmatpush.bf16.msra.mxu0 0
    %2239 = vmatpush.bf16.msra.mxu0 0
    %2240 = vmatpush.bf16.msra.mxu0 0
    %2241 = vmatpush.bf16.msra.mxu0 %v2216
    %2242 = vmatpush.bf16.msra.mxu0 %v2213
    %2243 = vmatmul.bf16.gmra.mxu0 %v2220
    %v2244 = vpop.f32.mrf.mxu0
    %v2245 = vadd.f32 0.0, %v2244
    %v2246 = vpop.f32.mrf.mxu0
    %2247 = vdwg.mxu0
    %2248 = vmatpush.bf16.msra.mxu0 0
    %2249 = vmatpush.bf16.msra.mxu0 0
    %2250 = vmatpush.bf16.msra.mxu0 0
    %2251 = vmatpush.bf16.msra.mxu0 0
    %2252 = vmatpush.bf16.msra.mxu0 0
    %2253 = vmatpush.bf16.msra.mxu0 0
    %2254 = vmatpush.bf16.msra.mxu0 %v2217
    %2255 = vmatpush.bf16.msra.mxu0 %v2214
    %2256 = vmatmul.bf16.gmra.mxu0 %v2220
    %v2257 = vpop.f32.mrf.mxu0
    %v2258 = vadd.f32 0.0, %v2257
    %v2259 = vpop.f32.mrf.mxu0
    %2260 = vdwg.mxu0
    %v2261 = vld [vmem:[%s9] sm:$0xff]
    %v2262 = vld [vmem:[%s9 + $0x8] sm:$0xff]
    %v2263 = vld [vmem:[%s9 + $0x10] sm:$0xff]
    %v2264 = vld [vmem:[%s9 + $0x18] sm:$0xff]
    %v2265 = vld [vmem:[%s9 + $0x20] sm:$0xff]
    %v2266 = vld [vmem:[%s9 + $0x28] sm:$0xff]
    %v2267 = vld [vmem:[%s9 + $0x30] sm:$0xff]
    %v2268 = vld [vmem:[%s9 + $0x38] sm:$0xff]
    %v2269 = vld [vmem:[%s9 + $0x40] sm:$0xff]
    %v2270 = vld [vmem:[%s9 + $0x48] sm:$0xff]
    %v2271 = vld [vmem:[%s9 + $0x50] sm:$0xff]
    %v2272 = vld [vmem:[%s9 + $0x58] sm:$0xff]
    %v2273 = vld [vmem:[%s9 + $0x60] sm:$0xff]
    %v2274 = vld [vmem:[%s9 + $0x68] sm:$0xff]
    %v2275 = vld [vmem:[%s9 + $0x70] sm:$0xff]
    %v2276 = vld [vmem:[%s9 + $0x78] sm:$0xff]
    %v2277 = vld [vmem:[%s9 + $0x80] sm:$0xff]
    %v2278 = vld [vmem:[%s9 + $0x88] sm:$0xff]
    %v2279 = vld [vmem:[%s9 + $0x90] sm:$0xff]
    %v2280 = vld [vmem:[%s9 + $0x98] sm:$0xff]
    %v2281 = vld [vmem:[%s9 + $0xa0] sm:$0xff]
    %v2282 = vld [vmem:[%s9 + $0xa8] sm:$0xff]
    %v2283 = vld [vmem:[%s9 + $0xb0] sm:$0xff]
    %v2284 = vld [vmem:[%s9 + $0xb8] sm:$0xff]
    %v2285 = vld [vmem:[%s9 + $0xc0] sm:$0xff]
    %v2286 = vld [vmem:[%s9 + $0xc8] sm:$0xff]
    %v2287 = vld [vmem:[%s9 + $0xd0] sm:$0xff]
    %v2288 = vld [vmem:[%s9 + $0xd8] sm:$0xff]
    %v2289 = vld [vmem:[%s9 + $0xe0] sm:$0xff]
    %v2290 = vld [vmem:[%s9 + $0xe8] sm:$0xff]
    %v2291 = vld [vmem:[%s9 + $0xf0] sm:$0xff]
    %v2292 = vld [vmem:[%s9 + $0xf8] sm:$0xff]
    %v2293 = vld [vmem:[%s9 + $0x100] sm:$0xff]
    %v2294 = vld [vmem:[%s9 + $0x108] sm:$0xff]
    %v2295 = vld [vmem:[%s9 + $0x110] sm:$0xff]
    %v2296 = vld [vmem:[%s9 + $0x118] sm:$0xff]
    %v2297 = vld [vmem:[%s9 + $0x120] sm:$0xff]
    %v2298 = vld [vmem:[%s9 + $0x128] sm:$0xff]
    %v2299 = vld [vmem:[%s9 + $0x130] sm:$0xff]
    %v2300 = vld [vmem:[%s9 + $0x138] sm:$0xff]
    %v2301 = vld [vmem:[%s9 + $0x140] sm:$0xff]
    %v2302 = vld [vmem:[%s9 + $0x148] sm:$0xff]
    %v2303 = vld [vmem:[%s9 + $0x150] sm:$0xff]
    %v2304 = vld [vmem:[%s9 + $0x158] sm:$0xff]
    %v2305 = vld [vmem:[%s9 + $0x160] sm:$0xff]
    %v2306 = vld [vmem:[%s9 + $0x168] sm:$0xff]
    %v2307 = vld [vmem:[%s9 + $0x170] sm:$0xff]
    %v2308 = vld [vmem:[%s9 + $0x178] sm:$0xff]
    %v2309 = vld [vmem:[%s9 + $0x180] sm:$0xff]
    %v2310 = vld [vmem:[%s9 + $0x188] sm:$0xff]
    %v2311 = vld [vmem:[%s9 + $0x190] sm:$0xff]
    %v2312 = vld [vmem:[%s9 + $0x198] sm:$0xff]
    %v2313 = vld [vmem:[%s9 + $0x1a0] sm:$0xff]
    %v2314 = vld [vmem:[%s9 + $0x1a8] sm:$0xff]
    %v2315 = vld [vmem:[%s9 + $0x1b0] sm:$0xff]
    %v2316 = vld [vmem:[%s9 + $0x1b8] sm:$0xff]
    %v2317 = vld [vmem:[%s9 + $0x1c0] sm:$0xff]
    %v2318 = vld [vmem:[%s9 + $0x1c8] sm:$0xff]
    %v2319 = vld [vmem:[%s9 + $0x1d0] sm:$0xff]
    %v2320 = vld [vmem:[%s9 + $0x1d8] sm:$0xff]
    %v2321 = vld [vmem:[%s9 + $0x1e0] sm:$0xff]
    %v2322 = vld [vmem:[%s9 + $0x1e8] sm:$0xff]
    %v2323 = vld [vmem:[%s9 + $0x1f0] sm:$0xff]
    %v2324 = vld [vmem:[%s9 + $0x1f8] sm:$0xff]
    %v2325 = vld [vmem:[%s9 + $0x200] sm:$0xff]
    %v2326 = vld [vmem:[%s9 + $0x208] sm:$0xff]
    %v2327 = vld [vmem:[%s9 + $0x210] sm:$0xff]
    %v2328 = vld [vmem:[%s9 + $0x218] sm:$0xff]
    %v2329 = vld [vmem:[%s9 + $0x220] sm:$0xff]
    %v2330 = vld [vmem:[%s9 + $0x228] sm:$0xff]
    %v2331 = vld [vmem:[%s9 + $0x230] sm:$0xff]
    %v2332 = vld [vmem:[%s9 + $0x238] sm:$0xff]
    %v2333 = vld [vmem:[%s9 + $0x240] sm:$0xff]
    %v2334 = vld [vmem:[%s9 + $0x248] sm:$0xff]
    %v2335 = vld [vmem:[%s9 + $0x250] sm:$0xff]
    %v2336 = vld [vmem:[%s9 + $0x258] sm:$0xff]
    %v2337 = vld [vmem:[%s9 + $0x260] sm:$0xff]
    %v2338 = vld [vmem:[%s9 + $0x268] sm:$0xff]
    %v2339 = vld [vmem:[%s9 + $0x270] sm:$0xff]
    %v2340 = vld [vmem:[%s9 + $0x278] sm:$0xff]
    %v2341 = vld [vmem:[%s9 + $0x280] sm:$0xff]
    %v2342 = vld [vmem:[%s9 + $0x288] sm:$0xff]
    %v2343 = vld [vmem:[%s9 + $0x290] sm:$0xff]
    %v2344 = vld [vmem:[%s9 + $0x298] sm:$0xff]
    %v2345 = vld [vmem:[%s9 + $0x2a0] sm:$0xff]
    %v2346 = vld [vmem:[%s9 + $0x2a8] sm:$0xff]
    %v2347 = vld [vmem:[%s9 + $0x2b0] sm:$0xff]
    %v2348 = vld [vmem:[%s9 + $0x2b8] sm:$0xff]
    %v2349 = vld [vmem:[%s9 + $0x2c0] sm:$0xff]
    %v2350 = vld [vmem:[%s9 + $0x2c8] sm:$0xff]
    %v2351 = vld [vmem:[%s9 + $0x2d0] sm:$0xff]
    %v2352 = vld [vmem:[%s9 + $0x2d8] sm:$0xff]
    %v2353 = vld [vmem:[%s9 + $0x2e0] sm:$0xff]
    %v2354 = vld [vmem:[%s9 + $0x2e8] sm:$0xff]
    %v2355 = vld [vmem:[%s9 + $0x2f0] sm:$0xff]
    %v2356 = vld [vmem:[%s9 + $0x2f8] sm:$0xff]
    %v2357 = vld [vmem:[%s10] sm:$0x3]
    %v2359 = vperm.slane %v2357, 0
    %v2360 = vperm.slane %v2357, 1
    %2363 = vmatpush.msra.mxu0 %v2291
    %2364 = vmatpush.msra.mxu0 %v2289
    %2365 = vmatpush.msra.mxu0 %v2287
    %2366 = vmatpush.msra.mxu0 %v2285
    %2367 = vmatpush.msra.mxu0 %v2283
    %2368 = vmatpush.msra.mxu0 %v2281
    %2369 = vmatpush.msra.mxu0 %v2279
    %2370 = vmatpush.msra.mxu0 %v2277
    %2371 = vmatpush.msra.mxu0 %v2275
    %2372 = vmatpush.msra.mxu0 %v2273
    %2373 = vmatpush.msra.mxu0 %v2271
    %2374 = vmatpush.msra.mxu0 %v2269
    %2375 = vmatpush.msra.mxu0 %v2267
    %2376 = vmatpush.msra.mxu0 %v2265
    %2377 = vmatpush.msra.mxu0 %v2263
    %2378 = vmatpush.msra.mxu0 %v2261
    %2379 = vmatmul.f32.gmra.mxu0 %v2232
    %v2380 = vpop.f32.mrf.mxu0
    %v2381 = vadd.f32 %v2359, %v2380
    %2382 = vdwg.mxu0
    %2383 = vmatpush.msra.mxu0 %v2323
    %2384 = vmatpush.msra.mxu0 %v2321
    %2385 = vmatpush.msra.mxu0 %v2319
    %2386 = vmatpush.msra.mxu0 %v2317
    %2387 = vmatpush.msra.mxu0 %v2315
    %2388 = vmatpush.msra.mxu0 %v2313
    %2389 = vmatpush.msra.mxu0 %v2311
    %2390 = vmatpush.msra.mxu0 %v2309
    %2391 = vmatpush.msra.mxu0 %v2307
    %2392 = vmatpush.msra.mxu0 %v2305
    %2393 = vmatpush.msra.mxu0 %v2303
    %2394 = vmatpush.msra.mxu0 %v2301
    %2395 = vmatpush.msra.mxu0 %v2299
    %2396 = vmatpush.msra.mxu0 %v2297
    %2397 = vmatpush.msra.mxu0 %v2295
    %2398 = vmatpush.msra.mxu0 %v2293
    %2399 = vmatmul.f32.gmra.mxu0 %v2245
    %v2400 = vpop.f32.mrf.mxu0
    %v2401 = vadd.f32 %v2381, %v2400
    %2402 = vdwg.mxu0
    %2403 = vmatpush.msra.mxu0 %v2355
    %2404 = vmatpush.msra.mxu0 %v2353
    %2405 = vmatpush.msra.mxu0 %v2351
    %2406 = vmatpush.msra.mxu0 %v2349
    %2407 = vmatpush.msra.mxu0 %v2347
    %2408 = vmatpush.msra.mxu0 %v2345
    %2409 = vmatpush.msra.mxu0 %v2343
    %2410 = vmatpush.msra.mxu0 %v2341
    %2411 = vmatpush.msra.mxu0 %v2339
    %2412 = vmatpush.msra.mxu0 %v2337
    %2413 = vmatpush.msra.mxu0 %v2335
    %2414 = vmatpush.msra.mxu0 %v2333
    %2415 = vmatpush.msra.mxu0 %v2331
    %2416 = vmatpush.msra.mxu0 %v2329
    %2417 = vmatpush.msra.mxu0 %v2327
    %2418 = vmatpush.msra.mxu0 %v2325
    %2419 = vmatmul.f32.gmra.mxu0 %v2258
    %v2420 = vpop.f32.mrf.mxu0
    %v2421 = vadd.f32 %v2401, %v2420
    %2422 = vdwg.mxu0
    %2423 = vmatpush.msra.mxu0 %v2292
    %2424 = vmatpush.msra.mxu0 %v2290
    %2425 = vmatpush.msra.mxu0 %v2288
    %2426 = vmatpush.msra.mxu0 %v2286
    %2427 = vmatpush.msra.mxu0 %v2284
    %2428 = vmatpush.msra.mxu0 %v2282
    %2429 = vmatpush.msra.mxu0 %v2280
    %2430 = vmatpush.msra.mxu0 %v2278
    %2431 = vmatpush.msra.mxu0 %v2276
    %2432 = vmatpush.msra.mxu0 %v2274
    %2433 = vmatpush.msra.mxu0 %v2272
    %2434 = vmatpush.msra.mxu0 %v2270
    %2435 = vmatpush.msra.mxu0 %v2268
    %2436 = vmatpush.msra.mxu0 %v2266
    %2437 = vmatpush.msra.mxu0 %v2264
    %2438 = vmatpush.msra.mxu0 %v2262
    %2439 = vmatmul.f32.gmra.mxu0 %v2232
    %v2440 = vpop.f32.mrf.mxu0
    %v2441 = vadd.f32 %v2360, %v2440
    %2442 = vdwg.mxu0
    %2443 = vmatpush.msra.mxu0 %v2324
    %2444 = vmatpush.msra.mxu0 %v2322
    %2445 = vmatpush.msra.mxu0 %v2320
    %2446 = vmatpush.msra.mxu0 %v2318
    %2447 = vmatpush.msra.mxu0 %v2316
    %2448 = vmatpush.msra.mxu0 %v2314
    %2449 = vmatpush.msra.mxu0 %v2312
    %2450 = vmatpush.msra.mxu0 %v2310
    %2451 = vmatpush.msra.mxu0 %v2308
    %2452 = vmatpush.msra.mxu0 %v2306
    %2453 = vmatpush.msra.mxu0 %v2304
    %2454 = vmatpush.msra.mxu0 %v2302
    %2455 = vmatpush.msra.mxu0 %v2300
    %2456 = vmatpush.msra.mxu0 %v2298
    %2457 = vmatpush.msra.mxu0 %v2296
    %2458 = vmatpush.msra.mxu0 %v2294
    %2459 = vmatmul.f32.gmra.mxu0 %v2245
    %v2460 = vpop.f32.mrf.mxu0
    %v2461 = vadd.f32 %v2441, %v2460
    %2462 = vdwg.mxu0
    %2463 = vmatpush.msra.mxu0 %v2356
    %2464 = vmatpush.msra.mxu0 %v2354
    %2465 = vmatpush.msra.mxu0 %v2352
    %2466 = vmatpush.msra.mxu0 %v2350
    %2467 = vmatpush.msra.mxu0 %v2348
    %2468 = vmatpush.msra.mxu0 %v2346
    %2469 = vmatpush.msra.mxu0 %v2344
    %2470 = vmatpush.msra.mxu0 %v2342
    %2471 = vmatpush.msra.mxu0 %v2340
    %2472 = vmatpush.msra.mxu0 %v2338
    %2473 = vmatpush.msra.mxu0 %v2336
    %2474 = vmatpush.msra.mxu0 %v2334
    %2475 = vmatpush.msra.mxu0 %v2332
    %2476 = vmatpush.msra.mxu0 %v2330
    %2477 = vmatpush.msra.mxu0 %v2328
    %2478 = vmatpush.msra.mxu0 %v2326
    %2479 = vmatmul.f32.gmra.mxu0 %v2258
    %v2480 = vpop.f32.mrf.mxu0
    %v2481 = vadd.f32 %v2461, %v2480
    %2482 = vdwg.mxu0
    %v2483 = vmax.f32 %v2421, 0.0
    %v2484 = vmax.f32 %v2481, 0.0
    %v2485 = vld [vmem:[%s11] sm:$0xff]
    %v2486 = vld [vmem:[%s11 + $0x8] sm:$0xff]
    %v2487 = vld [vmem:[%s11 + $0x10] sm:$0xff]
    %v2488 = vld [vmem:[%s11 + $0x18] sm:$0xff]
    %v2489 = vld [vmem:[%s11 + $0x20] sm:$0xff]
    %v2490 = vld [vmem:[%s11 + $0x28] sm:$0xff]
    %v2491 = vld [vmem:[%s11 + $0x30] sm:$0xff]
    %v2492 = vld [vmem:[%s11 + $0x38] sm:$0xff]
    %v2493 = vld [vmem:[%s11 + $0x40] sm:$0xff]
    %v2494 = vld [vmem:[%s11 + $0x48] sm:$0xff]
    %v2495 = vld [vmem:[%s11 + $0x50] sm:$0xff]
    %v2496 = vld [vmem:[%s11 + $0x58] sm:$0xff]
    %v2497 = vld [vmem:[%s11 + $0x60] sm:$0xff]
    %v2498 = vld [vmem:[%s11 + $0x68] sm:$0xff]
    %v2499 = vld [vmem:[%s11 + $0x70] sm:$0xff]
    %v2500 = vld [vmem:[%s11 + $0x78] sm:$0xff]
    %v2501 = vld [vmem:[%s11 + $0x80] sm:$0xff]
    %v2502 = vld [vmem:[%s11 + $0x88] sm:$0xff]
    %v2503 = vld [vmem:[%s11 + $0x90] sm:$0xff]
    %v2504 = vld [vmem:[%s11 + $0x98] sm:$0xff]
    %v2505 = vld [vmem:[%s11 + $0xa0] sm:$0xff]
    %v2506 = vld [vmem:[%s11 + $0xa8] sm:$0xff]
    %v2507 = vld [vmem:[%s11 + $0xb0] sm:$0xff]
    %v2508 = vld [vmem:[%s11 + $0xb8] sm:$0xff]
    %v2509 = vld [vmem:[%s11 + $0xc0] sm:$0xff]
    %v2510 = vld [vmem:[%s12] sm:$0x1]
    %v2512 = vperm.slane %v2510, 0
    %vm2514 = vcmask 588800
    %v2516 = vsel %vm2514, %v2484, 0
    %2518 = vmatpush.msra.mxu0 %v2500
    %2519 = vmatpush.msra.mxu0 %v2499
    %2520 = vmatpush.msra.mxu0 %v2498
    %2521 = vmatpush.msra.mxu0 %v2497
    %2522 = vmatpush.msra.mxu0 %v2496
    %2523 = vmatpush.msra.mxu0 %v2495
    %2524 = vmatpush.msra.mxu0 %v2494
    %2525 = vmatpush.msra.mxu0 %v2493
    %2526 = vmatpush.msra.mxu0 %v2492
    %2527 = vmatpush.msra.mxu0 %v2491
    %2528 = vmatpush.msra.mxu0 %v2490
    %2529 = vmatpush.msra.mxu0 %v2489
    %2530 = vmatpush.msra.mxu0 %v2488
    %2531 = vmatpush.msra.mxu0 %v2487
    %2532 = vmatpush.msra.mxu0 %v2486
    %2533 = vmatpush.msra.mxu0 %v2485
    %2534 = vmatmul.f32.gmra.mxu0 %v2483
    %v2535 = vpop.f32.mrf.mxu0
    %v2536 = vadd.f32 %v2512, %v2535
    %2537 = vdwg.mxu0
    %2538 = vmatpush.msra.mxu0 0.0
    %2539 = vmatpush.msra.mxu0 0.0
    %2540 = vmatpush.msra.mxu0 0.0
    %2541 = vmatpush.msra.mxu0 0.0
    %2542 = vmatpush.msra.mxu0 0.0
    %2543 = vmatpush.msra.mxu0 0.0
    %2544 = vmatpush.msra.mxu0 0.0
    %2545 = vmatpush.msra.mxu0 %v2509
    %2546 = vmatpush.msra.mxu0 %v2508
    %2547 = vmatpush.msra.mxu0 %v2507
    %2548 = vmatpush.msra.mxu0 %v2506
    %2549 = vmatpush.msra.mxu0 %v2505
    %2550 = vmatpush.msra.mxu0 %v2504
    %2551 = vmatpush.msra.mxu0 %v2503
    %2552 = vmatpush.msra.mxu0 %v2502
    %2553 = vmatpush.msra.mxu0 %v2501
    %2554 = vmatmul.f32.gmra.mxu0 %v2516
    %v2555 = vpop.f32.mrf.mxu0
    %v2556 = vadd.f32 %v2536, %v2555
    %2557 = vdwg.mxu0
    %v2558 = vmax.f32 %v2556, 0.0
    %v2559 = vld [vmem:[%s13] sm:$0xff]
    %v2560 = vld [vmem:[%s13 + $0x8] sm:$0xff]
    %v2561 = vld [vmem:[%s13 + $0x10] sm:$0xff]
    %v2562 = vld [vmem:[%s13 + $0x18] sm:$0xff]
    %v2563 = vld [vmem:[%s13 + $0x20] sm:$0xff]
    %v2564 = vld [vmem:[%s13 + $0x28] sm:$0xff]
    %v2565 = vld [vmem:[%s13 + $0x30] sm:$0xff]
    %v2566 = vld [vmem:[%s13 + $0x38] sm:$0xff]
    %v2567 = vld [vmem:[%s13 + $0x40] sm:$0xff]
    %v2568 = vld [vmem:[%s13 + $0x48] sm:$0xff]
    %v2569 = vld [vmem:[%s13 + $0x50] sm:$0xff]
    %v2570 = vld [vmem:[%s13 + $0x58] sm:$0xff]
    %v2571 = vld [vmem:[%s13 + $0x60] sm:$0xf]
    %v2572 = vld [vmem:[%s14] sm:$0x1]
    %v2574 = vperm.slane %v2572, 0
    %vm2576 = vcmask 818176
    %v2578 = vsel %vm2576, %v2558, 0
    %v2581 = vsel %vm2120, %v2571, 0
    %2583 = vmatpush.msra.mxu0 0.0
    %2584 = vmatpush.msra.mxu0 0.0
    %2585 = vmatpush.msra.mxu0 0.0
    %2586 = vmatpush.msra.mxu0 %v2581
    %2587 = vmatpush.msra.mxu0 %v2570
    %2588 = vmatpush.msra.mxu0 %v2569
    %2589 = vmatpush.msra.mxu0 %v2568
    %2590 = vmatpush.msra.mxu0 %v2567
    %2591 = vmatpush.msra.mxu0 %v2566
    %2592 = vmatpush.msra.mxu0 %v2565
    %2593 = vmatpush.msra.mxu0 %v2564
    %2594 = vmatpush.msra.mxu0 %v2563
    %2595 = vmatpush.msra.mxu0 %v2562
    %2596 = vmatpush.msra.mxu0 %v2561
    %2597 = vmatpush.msra.mxu0 %v2560
    %2598 = vmatpush.msra.mxu0 %v2559
    %2599 = vmatmul.f32.gmra.mxu0 %v2578
    %v2600 = vpop.f32.mrf.mxu0
    %v2601 = vadd.f32 %v2574, %v2600
    %2602 = vdwg.mxu0
    %vm2603 = vcmask 41984
    %2604 = vst.msk [vmem:[#allocation2] sm:$0x3] %vm2603, %v2601
    // Predicated region
    $region62: #{legos_forward.1} parent=1 // pred_check
      _
    $region63: #{legos_forward.1} parent=1 // pred_check_branch
      %2606 = sbr.rel (0) target = $region65
    $region64: #{legos_forward.1} parent=1 // pred_region
      %2608 = vsyncadd [#allocation3], 0
      %s2610 = sshll.u32 [#allocation2], 4
      %s2611 = int_to_ptr.vmem [resolvable:$true] %s2610
      %s2612 = sshll.u32 %s15, 4
      %s2613 = int_to_ptr.hbm [resolvable:$true] %s2612
      %2615 = dma.vmem_to_hbm [thread:$0]  %s2611, 32, %s2613, [#allocation3]
    $region65: #{legos_forward.1} parent=1 // pred_fallthru
      _
    // Predicated region
    $region66: #{legos_forward.1} parent=1 // pred_check
      _
    $region67: #{legos_forward.1} parent=1 // pred_check_branch
      %2617 = sbr.rel (0) target = $region69
    $region68: #{legos_forward.1} parent=1 // pred_region
      %2619 = dma.done [#allocation3], 32
    $region69: #{legos_forward.1} parent=1 // pred_fallthru
      _
    %2620 = vsyncpa [#allocation3], 1

</llo_original>
